<compile_context>
chip_gen: v7x
topology: tpu7x:2x2x1
jax: 0.10.0
libtpu: 0.0.40
codegen_flags: <defaults>
</compile_context>

<pallas_src>
import functools

import jax
import jax.numpy as jnp
import numpy as np
from jax import lax
from jax.experimental import pallas as pl
from jax.experimental.pallas import tpu as pltpu

LANE = 128


def _round_up(x, m):
    return (x + m - 1) // m * m


def _multibox_loss_kernel(conf_ref, lab_ref, ploc_ref, gloc_ref, out_ref,
                          lossm_ref, ce_ref, ljb_ref, acc_ref,
                          nposb_ref, regacc_ref, clsacc_ref,
                          *, neg_pos_ratio, num_priors, t_size):
    phase = pl.program_id(1)
    t = pl.program_id(2)
    nt = pl.num_programs(2)
    T = t_size
    NG = T // LANE

    labels = lab_ref[...]                          # (1, T) int32
    pos = labels > 0                               # (1, T) bool

    # ---- per-image init (first grid step of each batch element) ------------
    @pl.when(jnp.logical_and(phase == 0, t == 0))
    def _():
        nposb_ref[...] = jnp.zeros_like(nposb_ref)
        regacc_ref[...] = jnp.zeros_like(regacc_ref)
        clsacc_ref[...] = jnp.zeros_like(clsacc_ref)

    # ---- phase 0: single softmax pass -> cached bg-loss / CE rows ----------
    @pl.when(phase == 0)
    def _():
        conf = conf_ref[...].astype(jnp.float32)                 # (C, T)
        c = conf.shape[0]
        cmax = jnp.max(conf, axis=0, keepdims=True)
        lse = jnp.log(jnp.sum(jnp.exp(conf - cmax), axis=0,
                              keepdims=True)) + cmax             # (1, T)
        bg = lse - conf[0:1, :]                                  # (1, T)
        cls_iota = lax.broadcasted_iota(jnp.int32, (c, T), 0)
        at_label = jnp.sum(jnp.where(cls_iota == labels, conf, 0.0),
                           axis=0, keepdims=True)                # (1, T)
        ce = lse - at_label                                      # (1, T)

        start = pl.multiple_of(t * T, T)
        idx = lax.broadcasted_iota(jnp.int32, (1, T), 1) + t * T
        invalid = idx >= num_priors
        lossm_ref[:, pl.ds(start, T)] = jnp.where(
            jnp.logical_or(pos, invalid), jnp.float32(-jnp.inf), bg)
        ce_ref[:, pl.ds(start, T)] = ce
        nposb_ref[...] += jnp.sum(pos.astype(jnp.int32), keepdims=True)

        # Smooth-L1 (beta = 1) over the positive priors of this tile.
        ploc = ploc_ref[...].astype(jnp.float32)                 # (4, T)
        gloc = gloc_ref[...].astype(jnp.float32)
        diff = jnp.abs(ploc - gloc)
        sl1 = jnp.where(diff < 1.0, 0.5 * diff * diff, diff - 0.5)
        sl1_sum = jnp.sum(sl1, axis=0, keepdims=True)            # (1, T)
        regacc_ref[...] += jnp.sum(jnp.where(pos, sl1_sum, 0.0), keepdims=True)

    # ---- phase 1: pairwise hard-negative rank + classification loss --------
    @pl.when(phase == 1)
    def _():
        start_j = pl.multiple_of(t * T, T)
        # Lane -> sublane relayout + lane broadcast, once per (b, j).
        lj3 = lossm_ref[:, pl.ds(start_j, T)][:, :, None]        # (1, T, 1)
        ljb_ref[...] = jnp.broadcast_to(lj3, (1, T, LANE))
        acc_ref[...] = jnp.zeros_like(acc_ref)

        def accum_tile(k_tile, strict):
            # Accumulate per-lane-group "beats" counts; reduce deferred.
            for g in range(NG):
                s = pl.multiple_of(k_tile * T + g * LANE, LANE)
                lk = lossm_ref[:, pl.ds(s, LANE)][:, None, :]    # (1, 1, 128)
                if strict:
                    beats = lk > ljb_ref[...]
                else:
                    beats = lk >= ljb_ref[...]
                acc_ref[...] += beats.astype(jnp.int32)

        # k-tiles strictly before the j-tile: index tie-break resolves to >=.
        def body_before(k_tile, carry):
            accum_tile(k_tile, strict=False)
            return carry
        lax.fori_loop(0, t, body_before, 0)

        # k-tiles strictly after the j-tile: index tie-break resolves to >.
        def body_after(k_tile, carry):
            accum_tile(k_tile, strict=True)
            return carry
        lax.fori_loop(t + 1, nt, body_after, 0)

        # Diagonal tile: full tie-break on local prior indices.
        ljb = ljb_ref[...]
        jq = lax.broadcasted_iota(jnp.int32, (1, T, 1), 1)
        for g in range(NG):
            s = pl.multiple_of(t * T + g * LANE, LANE)
            lk = lossm_ref[:, pl.ds(s, LANE)][:, None, :]
            kq = lax.broadcasted_iota(jnp.int32, (1, 1, LANE), 2) + g * LANE
            beats = (lk > ljb) | ((lk == ljb) & (kq < jq))
            acc_ref[...] += beats.astype(jnp.int32)

        # Finalize this j-tile: 128 -> 1 lane reduce, mining mask, CE sum.
        rank = jnp.sum(acc_ref[...], axis=2)                     # (1, T)
        num_neg = nposb_ref[...] * neg_pos_ratio                 # (1, 1)
        idx = lax.broadcasted_iota(jnp.int32, (1, T), 1) + t * T
        valid = idx < num_priors
        mined = jnp.logical_and(jnp.logical_or(pos, rank < num_neg), valid)
        ce = ce_ref[:, pl.ds(start_j, T)]
        clsacc_ref[...] += jnp.sum(jnp.where(mined, ce, 0.0), keepdims=True)

        # Last grid step of this image: emit unnormalized per-image sums.
        @pl.when(t == nt - 1)
        def _():
            out_ref[0:1, :] = jnp.broadcast_to(regacc_ref[...], (1, LANE))
            out_ref[1:2, :] = jnp.broadcast_to(clsacc_ref[...], (1, LANE))
            out_ref[2:3, :] = jnp.broadcast_to(
                nposb_ref[...].astype(jnp.float32), (1, LANE))


def multibox_loss(confidence, predicted_locations, labels, gt_locations,
                  neg_pos_ratio, *, tile=256):
    """Returns (smooth_l1_loss / num_pos, classification_loss / num_pos)."""
    B, P, C = confidence.shape
    assert tile % LANE == 0
    T = min(tile, _round_up(P, LANE))
    ppad = _round_up(P, T)
    nj = ppad // T
    pad = ppad - P

    # Lane-dense layouts: priors on the 128-lane axis; C / 4 / 1 on sublanes.
    conf_t = jnp.transpose(confidence, (0, 2, 1))                # (B, C, P)
    ploc_t = jnp.transpose(predicted_locations, (0, 2, 1))       # (B, 4, P)
    gloc_t = jnp.transpose(gt_locations, (0, 2, 1))              # (B, 4, P)
    lab = labels.astype(jnp.int32)[:, None, :]                   # (B, 1, P)
    if pad:
        conf_t = jnp.pad(conf_t, ((0, 0), (0, 0), (0, pad)))
        ploc_t = jnp.pad(ploc_t, ((0, 0), (0, 0), (0, pad)))
        gloc_t = jnp.pad(gloc_t, ((0, 0), (0, 0), (0, pad)))
        lab = jnp.pad(lab, ((0, 0), (0, 0), (0, pad)))           # pad = bg

    kernel = functools.partial(_multibox_loss_kernel,
                               neg_pos_ratio=int(neg_pos_ratio),
                               num_priors=P, t_size=T)

    # Phase-gated index map: advances only in phase 0, then stays parked on
    # the last block so phase 1 issues no new DMA for conf / loc tensors.
    def gated_map(b, p, j):
        return (b, 0, j * (1 - p) + (nj - 1) * p)

    grid_spec = pltpu.PrefetchScalarGridSpec(
        num_scalar_prefetch=0,
        grid=(B, 2, nj),
        in_specs=[
            pl.BlockSpec((None, C, T), gated_map),               # confidence
            pl.BlockSpec((None, 1, T), lambda b, p, j: (b, 0, j)),  # labels
            pl.BlockSpec((None, 4, T), gated_map),               # pred locs
            pl.BlockSpec((None, 4, T), gated_map),               # gt locs
        ],
        out_specs=pl.BlockSpec((None, 3, LANE), lambda b, p, j: (b, 0, 0)),
        scratch_shapes=[
            pltpu.VMEM((1, ppad), jnp.float32),    # mined bg-loss row (image)
            pltpu.VMEM((1, ppad), jnp.float32),    # per-prior CE row (image)
            pltpu.VMEM((1, T, LANE), jnp.float32),  # lane-broadcast lossm_j
            pltpu.VMEM((1, T, LANE), jnp.int32),    # deferred rank partials
            pltpu.VMEM((1, 1), jnp.int32),          # per-image positive count
            pltpu.VMEM((1, 1), jnp.float32),        # per-image smooth-L1 sum
            pltpu.VMEM((1, 1), jnp.float32),        # per-image CE sum
        ],
    )
    out = pl.pallas_call(
        kernel,
        out_shape=jax.ShapeDtypeStruct((B, 3, LANE), jnp.float32),
        grid_spec=grid_spec,
        compiler_params=pltpu.CompilerParams(
            dimension_semantics=("parallel", "arbitrary", "arbitrary"),
            vmem_limit_bytes=32 * 1024 * 1024),
    )(conf_t, lab, ploc_t, gloc_t)

    reg_sum = jnp.sum(out[:, 0, 0])
    cls_sum = jnp.sum(out[:, 1, 0])
    num_pos = jnp.sum(out[:, 2, 0])   # matches reference: no zero-pos guard
    return reg_sum / num_pos, cls_sum / num_pos


def ref_multibox_loss(conf, ploc, labels, gloc, neg_pos_ratio):
    """Pure-JAX reference mirroring the PyTorch module (double-argsort mining)."""
    lsm = jax.nn.log_softmax(conf, axis=2)
    loss = -lsm[:, :, 0]
    pos_mask = labels > 0
    num_pos_b = pos_mask.sum(axis=1, keepdims=True)
    num_neg_b = num_pos_b * neg_pos_ratio
    loss_m = jnp.where(pos_mask, -jnp.inf, loss)
    indexes = jnp.argsort(-loss_m, axis=1)
    orders = jnp.argsort(indexes, axis=1)
    neg_mask = orders < num_neg_b
    mask = pos_mask | neg_mask
    ce = -jnp.take_along_axis(lsm, labels[..., None], axis=2)[..., 0]
    cls = jnp.sum(jnp.where(mask, ce, 0.0))
    diff = jnp.abs(ploc - gloc)
    sl1 = jnp.where(diff < 1.0, 0.5 * diff * diff, diff - 0.5)
    reg = jnp.sum(jnp.where(pos_mask[..., None], sl1, 0.0))
    n = pos_mask.sum().astype(jnp.float32)
    return reg / n, cls / n


if __name__ == "__main__":
    NEG_POS_RATIO = 3

    def make_inputs(key, B, P, C):
        k1, k2, k3, k4, k5 = jax.random.split(key, 5)
        conf = jax.random.normal(k1, (B, P, C), jnp.float32)
        ploc = jax.random.normal(k2, (B, P, 4), jnp.float32)
        gloc = jax.random.normal(k3, (B, P, 4), jnp.float32)
        cls = jax.random.randint(k4, (B, P), 1, C)
        is_pos = jax.random.bernoulli(k5, 0.15, (B, P))
        labels = jnp.where(is_pos, cls, 0).astype(jnp.int32)
        labels = labels.at[:, 0].set(1)   # at least one positive per image
        return conf, ploc, gloc, labels

    # Case 1: tiny prior count (single tile after lane padding 16 -> 128).
    conf, ploc, gloc, labels = make_inputs(jax.random.PRNGKey(0), 2, 16, 5)
    reg, cls_l = multibox_loss(conf, ploc, labels, gloc, NEG_POS_RATIO)
    jax.block_until_ready((reg, cls_l))
    reg_r, cls_r = ref_multibox_loss(conf, ploc, labels, gloc, NEG_POS_RATIO)
    assert np.allclose(np.asarray(reg), np.asarray(reg_r),
                       rtol=1e-5, atol=1e-5), (reg, reg_r)
    assert np.allclose(np.asarray(cls_l), np.asarray(cls_r),
                       rtol=1e-5, atol=1e-5), (cls_l, cls_r)

    # Case 2: multi-tile grid (200 priors, tile=128 -> 2 j-tiles) exercising
    # the off-diagonal fori_loops and the diagonal tie-break path.
    conf, ploc, gloc, labels = make_inputs(jax.random.PRNGKey(1), 2, 200, 5)
    reg, cls_l = multibox_loss(conf, ploc, labels, gloc, NEG_POS_RATIO,
                               tile=128)
    jax.block_until_ready((reg, cls_l))
    reg_r, cls_r = ref_multibox_loss(conf, ploc, labels, gloc, NEG_POS_RATIO)
    assert np.allclose(np.asarray(reg), np.asarray(reg_r),
                       rtol=1e-5, atol=1e-5), (reg, reg_r)
    assert np.allclose(np.asarray(cls_l), np.asarray(cls_r),
                       rtol=1e-5, atol=1e-5), (cls_l, cls_r)

    print("KERNEL_OK")
</pallas_src>

<mosaic_0001>
module attributes {stable_mosaic.version = 11 : i64} {
  func.func @_multibox_loss_kernel(%arg0: i32, %arg1: i32, %arg2: i32, %arg3: memref<1x5x128xf32, #tpu.memory_space<vmem>>, %arg4: memref<1x1x128xi32, #tpu.memory_space<vmem>>, %arg5: memref<1x4x128xf32, #tpu.memory_space<vmem>>, %arg6: memref<1x4x128xf32, #tpu.memory_space<vmem>>, %arg7: memref<1x3x128xf32, #tpu.memory_space<vmem>>, %arg8: memref<1x128xf32, #tpu.memory_space<vmem>>, %arg9: memref<1x128xf32, #tpu.memory_space<vmem>>, %arg10: memref<1x128x128xf32, #tpu.memory_space<vmem>>, %arg11: memref<1x128x128xi32, #tpu.memory_space<vmem>>, %arg12: memref<1x1xi32, #tpu.memory_space<vmem>>, %arg13: memref<1x1xf32, #tpu.memory_space<vmem>>, %arg14: memref<1x1xf32, #tpu.memory_space<vmem>>) attributes {dimension_semantics = [#tpu.dimension_semantics<parallel>, #tpu.dimension_semantics<arbitrary>, #tpu.dimension_semantics<arbitrary>], iteration_bounds = array<i64: 2, 2, 1>, scalar_prefetch = 0 : i64, scratch_operands = 7 : i64, tpu.core_type = #tpu.core_type<tc>, window_params = [{transform_indices = @transform_0, window_bounds = array<i64: 1, 5, 128>}, {transform_indices = @transform_1, window_bounds = array<i64: 1, 1, 128>}, {transform_indices = @transform_2, window_bounds = array<i64: 1, 4, 128>}, {transform_indices = @transform_3, window_bounds = array<i64: 1, 4, 128>}, {transform_indices = @transform_4, window_bounds = array<i64: 1, 3, 128>}]} {
    %c0 = arith.constant 0 : index
    %c0_0 = arith.constant 0 : index
    %c0_1 = arith.constant 0 : index
    %0 = vector.load %arg4[%c0, %c0_0, %c0_1] : memref<1x1x128xi32, #tpu.memory_space<vmem>>, vector<1x1x128xi32>
    %1 = vector.shape_cast %0 : vector<1x1x128xi32> to vector<1x128xi32>
    %c0_i32 = arith.constant 0 : i32
    %2 = vector.broadcast %c0_i32 : i32 to vector<1x128xi32>
    %3 = arith.cmpi sgt, %1, %2 : vector<1x128xi32>
    %c0_i32_2 = arith.constant 0 : i32
    %4 = arith.cmpi eq, %arg1, %c0_i32_2 : i32
    %c0_i32_3 = arith.constant 0 : i32
    %5 = arith.cmpi eq, %arg2, %c0_i32_3 : i32
    %6 = arith.andi %4, %5 : i1
    %7 = arith.extui %6 : i1 to i32
    %c0_i32_4 = arith.constant 0 : i32
    %8 = arith.cmpi ne, %7, %c0_i32_4 : i32
    scf.if %8 {
      %c0_i32_8 = arith.constant 0 : i32
      %15 = vector.broadcast %c0_i32_8 : i32 to vector<1x1xi32>
      %c0_9 = arith.constant 0 : index
      %c0_10 = arith.constant 0 : index
      %16 = vector.load %arg12[%c0_9, %c0_10] : memref<1x1xi32, #tpu.memory_space<vmem>>, vector<1x1xi32>
      tpu.vector_store %arg12[%c0_9, %c0_10], %15 {strides = array<i32>} : memref<1x1xi32, #tpu.memory_space<vmem>>, vector<1x1xi32>,
      %cst = arith.constant 0.000000e+00 : f32
      %17 = vector.broadcast %cst : f32 to vector<1x1xf32>
      %c0_11 = arith.constant 0 : index
      %c0_12 = arith.constant 0 : index
      %18 = vector.load %arg13[%c0_11, %c0_12] : memref<1x1xf32, #tpu.memory_space<vmem>>, vector<1x1xf32>
      tpu.vector_store %arg13[%c0_11, %c0_12], %17 {strides = array<i32>} : memref<1x1xf32, #tpu.memory_space<vmem>>, vector<1x1xf32>,
      %cst_13 = arith.constant 0.000000e+00 : f32
      %19 = vector.broadcast %cst_13 : f32 to vector<1x1xf32>
      %c0_14 = arith.constant 0 : index
      %c0_15 = arith.constant 0 : index
      %20 = vector.load %arg14[%c0_14, %c0_15] : memref<1x1xf32, #tpu.memory_space<vmem>>, vector<1x1xf32>
      tpu.vector_store %arg14[%c0_14, %c0_15], %19 {strides = array<i32>} : memref<1x1xf32, #tpu.memory_space<vmem>>, vector<1x1xf32>,
    } else {
    }
    %c0_i32_5 = arith.constant 0 : i32
    %9 = arith.cmpi eq, %arg1, %c0_i32_5 : i32
    %10 = arith.extui %9 : i1 to i32
    %c0_i32_6 = arith.constant 0 : i32
    %11 = arith.cmpi ne, %10, %c0_i32_6 : i32
    scf.if %11 {
      %c0_8 = arith.constant 0 : index
      %c0_9 = arith.constant 0 : index
      %c0_10 = arith.constant 0 : index
      %15 = vector.load %arg3[%c0_8, %c0_9, %c0_10] : memref<1x5x128xf32, #tpu.memory_space<vmem>>, vector<1x5x128xf32>
      %16 = vector.shape_cast %15 : vector<1x5x128xf32> to vector<5x128xf32>
      %cst = arith.constant dense<0xFF800000> : vector<128xf32>
      %17 = vector.multi_reduction <maximumf>, %16, %cst [0] : vector<5x128xf32> to vector<128xf32>
      %18 = vector.shape_cast %17 : vector<128xf32> to vector<1x128xf32>
      %19 = vector.broadcast %18 : vector<1x128xf32> to vector<5x128xf32>
      %20 = arith.subf %16, %19 : vector<5x128xf32>
      %21 = math.exp %20 : vector<5x128xf32>
      %cst_11 = arith.constant dense<0.000000e+00> : vector<128xf32>
      %22 = vector.multi_reduction <add>, %21, %cst_11 [0] : vector<5x128xf32> to vector<128xf32>
      %23 = vector.shape_cast %22 : vector<128xf32> to vector<1x128xf32>
      %24 = math.log %23 : vector<1x128xf32>
      %25 = arith.addf %24, %18 : vector<1x128xf32>
      %26 = vector.extract_strided_slice %16 {offsets = [0, 0], sizes = [1, 128], strides = [1, 1]} : vector<5x128xf32> to vector<1x128xf32>
      %27 = arith.subf %25, %26 : vector<1x128xf32>
      %28 = tpu.iota {dimensions = array<i32: 0>} : vector<5x128xi32>
      %29 = vector.broadcast %1 : vector<1x128xi32> to vector<5x128xi32>
      %30 = arith.cmpi eq, %28, %29 : vector<5x128xi32>
      %cst_12 = arith.constant 0.000000e+00 : f32
      %31 = vector.broadcast %cst_12 : f32 to vector<5x128xf32>
      %32 = arith.select %30, %16, %31 : vector<5x128xi1>, vector<5x128xf32>
      %cst_13 = arith.constant dense<0.000000e+00> : vector<128xf32>
      %33 = vector.multi_reduction <add>, %32, %cst_13 [0] : vector<5x128xf32> to vector<128xf32>
      %34 = vector.shape_cast %33 : vector<128xf32> to vector<1x128xf32>
      %35 = arith.subf %25, %34 : vector<1x128xf32>
      %c128_i32 = arith.constant 128 : i32
      %36 = arith.muli %arg2, %c128_i32 : i32
      %37 = tpu.assume_multiple %36, 128 : i32
      %38 = tpu.iota {dimensions = array<i32: 1>} : vector<1x128xi32>
      %c128_i32_14 = arith.constant 128 : i32
      %39 = arith.muli %arg2, %c128_i32_14 : i32
      %40 = vector.broadcast %39 : i32 to vector<1x128xi32>
      %41 = arith.addi %38, %40 : vector<1x128xi32>
      %c16_i32 = arith.constant 16 : i32
      %42 = vector.broadcast %c16_i32 : i32 to vector<1x128xi32>
      %43 = arith.cmpi sge, %41, %42 : vector<1x128xi32>
      %44 = arith.ori %3, %43 : vector<1x128xi1>
      %cst_15 = arith.constant 0xFF800000 : f32
      %45 = vector.broadcast %cst_15 : f32 to vector<1x128xf32>
      %46 = arith.select %44, %45, %27 : vector<1x128xi1>, vector<1x128xf32>
      %c0_16 = arith.constant 0 : index
      %47 = arith.index_cast %37 : i32 to index
      %48 = vector.load %arg8[%c0_16, %47] : memref<1x128xf32, #tpu.memory_space<vmem>>, vector<1x128xf32>
      tpu.vector_store %arg8[%c0_16, %47], %46 {strides = array<i32>} : memref<1x128xf32, #tpu.memory_space<vmem>>, vector<1x128xf32>,
      %c0_17 = arith.constant 0 : index
      %49 = arith.index_cast %37 : i32 to index
      %50 = vector.load %arg9[%c0_17, %49] : memref<1x128xf32, #tpu.memory_space<vmem>>, vector<1x128xf32>
      tpu.vector_store %arg9[%c0_17, %49], %35 {strides = array<i32>} : memref<1x128xf32, #tpu.memory_space<vmem>>, vector<1x128xf32>,
      %c0_18 = arith.constant 0 : index
      %c0_19 = arith.constant 0 : index
      %51 = vector.load %arg12[%c0_18, %c0_19] : memref<1x1xi32, #tpu.memory_space<vmem>>, vector<1x1xi32>
      %52 = arith.extui %3 : vector<1x128xi1> to vector<1x128xi32>
      %53 = vector.shape_cast %52 : vector<1x128xi32> to vector<1x1x128xi32>
      %cst_20 = arith.constant dense<0> : vector<1xi32>
      %54 = vector.multi_reduction <add>, %53, %cst_20 [1, 2] : vector<1x1x128xi32> to vector<1xi32>
      %55 = vector.shape_cast %54 : vector<1xi32> to vector<1x1x1xi32>
      %56 = vector.extract %55[0, 0, 0] : i32 from vector<1x1x1xi32>
      %57 = vector.broadcast %56 : i32 to vector<1x1xi32>
      %58 = arith.addi %51, %57 : vector<1x1xi32>
      %c0_21 = arith.constant 0 : index
      %c0_22 = arith.constant 0 : index
      %59 = vector.load %arg12[%c0_21, %c0_22] : memref<1x1xi32, #tpu.memory_space<vmem>>, vector<1x1xi32>
      tpu.vector_store %arg12[%c0_21, %c0_22], %58 {strides = array<i32>} : memref<1x1xi32, #tpu.memory_space<vmem>>, vector<1x1xi32>,
      %c0_23 = arith.constant 0 : index
      %c0_24 = arith.constant 0 : index
      %c0_25 = arith.constant 0 : index
      %60 = vector.load %arg5[%c0_23, %c0_24, %c0_25] : memref<1x4x128xf32, #tpu.memory_space<vmem>>, vector<1x4x128xf32>
      %61 = vector.shape_cast %60 : vector<1x4x128xf32> to vector<4x128xf32>
      %c0_26 = arith.constant 0 : index
      %c0_27 = arith.constant 0 : index
      %c0_28 = arith.constant 0 : index
      %62 = vector.load %arg6[%c0_26, %c0_27, %c0_28] : memref<1x4x128xf32, #tpu.memory_space<vmem>>, vector<1x4x128xf32>
      %63 = vector.shape_cast %62 : vector<1x4x128xf32> to vector<4x128xf32>
      %64 = arith.subf %61, %63 : vector<4x128xf32>
      %65 = math.absf %64 : vector<4x128xf32>
      %cst_29 = arith.constant 1.000000e+00 : f32
      %66 = vector.broadcast %cst_29 : f32 to vector<4x128xf32>
      %67 = arith.cmpf olt, %65, %66 : vector<4x128xf32>
      %cst_30 = arith.constant 5.000000e-01 : f32
      %68 = vector.broadcast %cst_30 : f32 to vector<4x128xf32>
      %69 = arith.mulf %68, %65 : vector<4x128xf32>
      %70 = arith.mulf %69, %65 : vector<4x128xf32>
      %cst_31 = arith.constant 5.000000e-01 : f32
      %71 = vector.broadcast %cst_31 : f32 to vector<4x128xf32>
      %72 = arith.subf %65, %71 : vector<4x128xf32>
      %73 = arith.select %67, %70, %72 : vector<4x128xi1>, vector<4x128xf32>
      %cst_32 = arith.constant dense<0.000000e+00> : vector<128xf32>
      %74 = vector.multi_reduction <add>, %73, %cst_32 [0] : vector<4x128xf32> to vector<128xf32>
      %75 = vector.shape_cast %74 : vector<128xf32> to vector<1x128xf32>
      %c0_33 = arith.constant 0 : index
      %c0_34 = arith.constant 0 : index
      %76 = vector.load %arg13[%c0_33, %c0_34] : memref<1x1xf32, #tpu.memory_space<vmem>>, vector<1x1xf32>
      %cst_35 = arith.constant 0.000000e+00 : f32
      %77 = vector.broadcast %cst_35 : f32 to vector<1x128xf32>
      %78 = arith.select %3, %75, %77 : vector<1x128xi1>, vector<1x128xf32>
      %79 = vector.shape_cast %78 : vector<1x128xf32> to vector<1x1x128xf32>
      %cst_36 = arith.constant dense<0.000000e+00> : vector<1xf32>
      %80 = vector.multi_reduction <add>, %79, %cst_36 [1, 2] : vector<1x1x128xf32> to vector<1xf32>
      %81 = vector.shape_cast %80 : vector<1xf32> to vector<1x1x1xf32>
      %82 = vector.extract %81[0, 0, 0] : f32 from vector<1x1x1xf32>
      %83 = vector.broadcast %82 : f32 to vector<1x1xf32>
      %84 = arith.addf %76, %83 : vector<1x1xf32>
      %c0_37 = arith.constant 0 : index
      %c0_38 = arith.constant 0 : index
      %85 = vector.load %arg13[%c0_37, %c0_38] : memref<1x1xf32, #tpu.memory_space<vmem>>, vector<1x1xf32>
      tpu.vector_store %arg13[%c0_37, %c0_38], %84 {strides = array<i32>} : memref<1x1xf32, #tpu.memory_space<vmem>>, vector<1x1xf32>,
    } else {
    }
    %c1_i32 = arith.constant 1 : i32
    %12 = arith.cmpi eq, %arg1, %c1_i32 : i32
    %13 = arith.extui %12 : i1 to i32
    %c0_i32_7 = arith.constant 0 : i32
    %14 = arith.cmpi ne, %13, %c0_i32_7 : i32
    scf.if %14 {
      %c128_i32 = arith.constant 128 : i32
      %15 = arith.muli %arg2, %c128_i32 : i32
      %16 = tpu.assume_multiple %15, 128 : i32
      %c0_8 = arith.constant 0 : index
      %17 = arith.index_cast %16 : i32 to index
      %18 = vector.load %arg8[%c0_8, %17] : memref<1x128xf32, #tpu.memory_space<vmem>>, vector<1x128xf32>
      %19 = vector.shape_cast %18 : vector<1x128xf32> to vector<1x128x1xf32>
      %20 = vector.shape_cast %19 : vector<1x128x1xf32> to vector<1x128x1xf32>
      %21 = vector.broadcast %20 : vector<1x128x1xf32> to vector<1x128x128xf32>
      %c0_9 = arith.constant 0 : index
      %c0_10 = arith.constant 0 : index
      %c0_11 = arith.constant 0 : index
      %22 = vector.load %arg10[%c0_9, %c0_10, %c0_11] : memref<1x128x128xf32, #tpu.memory_space<vmem>>, vector<1x128x128xf32>
      tpu.vector_store %arg10[%c0_9, %c0_10, %c0_11], %21 {strides = array<i32>} : memref<1x128x128xf32, #tpu.memory_space<vmem>>, vector<1x128x128xf32>,
      %c0_i32_12 = arith.constant 0 : i32
      %23 = vector.broadcast %c0_i32_12 : i32 to vector<1x128x128xi32>
      %c0_13 = arith.constant 0 : index
      %c0_14 = arith.constant 0 : index
      %c0_15 = arith.constant 0 : index
      %24 = vector.load %arg11[%c0_13, %c0_14, %c0_15] : memref<1x128x128xi32, #tpu.memory_space<vmem>>, vector<1x128x128xi32>
      tpu.vector_store %arg11[%c0_13, %c0_14, %c0_15], %23 {strides = array<i32>} : memref<1x128x128xi32, #tpu.memory_space<vmem>>, vector<1x128x128xi32>,
      %c0_i32_16 = arith.constant 0 : i32
      %c0_i32_17 = arith.constant 0 : i32
      %25 = arith.subi %arg2, %c0_i32_17 : i32
      %26 = arith.addi %c0_i32_17, %25 : i32
      %c1_i32_18 = arith.constant 1 : i32
      scf.for %arg15 = %c0_i32_17 to %26 step %c1_i32_18  : i32 {
        %c128_i32_51 = arith.constant 128 : i32
        %84 = arith.muli %arg15, %c128_i32_51 : i32
        %c0_i32_52 = arith.constant 0 : i32
        %85 = arith.addi %84, %c0_i32_52 : i32
        %86 = tpu.assume_multiple %85, 128 : i32
        %c0_53 = arith.constant 0 : index
        %87 = arith.index_cast %86 : i32 to index
        %88 = vector.load %arg8[%c0_53, %87] : memref<1x128xf32, #tpu.memory_space<vmem>>, vector<1x128xf32>
        %89 = vector.shape_cast %88 : vector<1x128xf32> to vector<1x1x128xf32>
        %c0_54 = arith.constant 0 : index
        %c0_55 = arith.constant 0 : index
        %c0_56 = arith.constant 0 : index
        %90 = vector.load %arg10[%c0_54, %c0_55, %c0_56] : memref<1x128x128xf32, #tpu.memory_space<vmem>>, vector<1x128x128xf32>
        %91 = vector.broadcast %89 : vector<1x1x128xf32> to vector<1x128x128xf32>
        %92 = arith.cmpf oge, %91, %90 : vector<1x128x128xf32>
        %c0_57 = arith.constant 0 : index
        %c0_58 = arith.constant 0 : index
        %c0_59 = arith.constant 0 : index
        %93 = vector.load %arg11[%c0_57, %c0_58, %c0_59] : memref<1x128x128xi32, #tpu.memory_space<vmem>>, vector<1x128x128xi32>
        %94 = arith.extui %92 : vector<1x128x128xi1> to vector<1x128x128xi32>
        %95 = arith.addi %93, %94 : vector<1x128x128xi32>
        %c0_60 = arith.constant 0 : index
        %c0_61 = arith.constant 0 : index
        %c0_62 = arith.constant 0 : index
        %96 = vector.load %arg11[%c0_60, %c0_61, %c0_62] : memref<1x128x128xi32, #tpu.memory_space<vmem>>, vector<1x128x128xi32>
        tpu.vector_store %arg11[%c0_60, %c0_61, %c0_62], %95 {strides = array<i32>} : memref<1x128x128xi32, #tpu.memory_space<vmem>>, vector<1x128x128xi32>,
      }
      %c1_i32_19 = arith.constant 1 : i32
      %27 = arith.addi %arg2, %c1_i32_19 : i32
      %c0_i32_20 = arith.constant 0 : i32
      %c1_i32_21 = arith.constant 1 : i32
      %28 = arith.subi %c1_i32_21, %27 : i32
      %29 = arith.addi %27, %28 : i32
      %c1_i32_22 = arith.constant 1 : i32
      scf.for %arg15 = %27 to %29 step %c1_i32_22  : i32 {
        %c128_i32_51 = arith.constant 128 : i32
        %84 = arith.muli %arg15, %c128_i32_51 : i32
        %c0_i32_52 = arith.constant 0 : i32
        %85 = arith.addi %84, %c0_i32_52 : i32
        %86 = tpu.assume_multiple %85, 128 : i32
        %c0_53 = arith.constant 0 : index
        %87 = arith.index_cast %86 : i32 to index
        %88 = vector.load %arg8[%c0_53, %87] : memref<1x128xf32, #tpu.memory_space<vmem>>, vector<1x128xf32>
        %89 = vector.shape_cast %88 : vector<1x128xf32> to vector<1x1x128xf32>
        %c0_54 = arith.constant 0 : index
        %c0_55 = arith.constant 0 : index
        %c0_56 = arith.constant 0 : index
        %90 = vector.load %arg10[%c0_54, %c0_55, %c0_56] : memref<1x128x128xf32, #tpu.memory_space<vmem>>, vector<1x128x128xf32>
        %91 = vector.broadcast %89 : vector<1x1x128xf32> to vector<1x128x128xf32>
        %92 = arith.cmpf ogt, %91, %90 : vector<1x128x128xf32>
        %c0_57 = arith.constant 0 : index
        %c0_58 = arith.constant 0 : index
        %c0_59 = arith.constant 0 : index
        %93 = vector.load %arg11[%c0_57, %c0_58, %c0_59] : memref<1x128x128xi32, #tpu.memory_space<vmem>>, vector<1x128x128xi32>
        %94 = arith.extui %92 : vector<1x128x128xi1> to vector<1x128x128xi32>
        %95 = arith.addi %93, %94 : vector<1x128x128xi32>
        %c0_60 = arith.constant 0 : index
        %c0_61 = arith.constant 0 : index
        %c0_62 = arith.constant 0 : index
        %96 = vector.load %arg11[%c0_60, %c0_61, %c0_62] : memref<1x128x128xi32, #tpu.memory_space<vmem>>, vector<1x128x128xi32>
        tpu.vector_store %arg11[%c0_60, %c0_61, %c0_62], %95 {strides = array<i32>} : memref<1x128x128xi32, #tpu.memory_space<vmem>>, vector<1x128x128xi32>,
      }
      %c0_23 = arith.constant 0 : index
      %c0_24 = arith.constant 0 : index
      %c0_25 = arith.constant 0 : index
      %30 = vector.load %arg10[%c0_23, %c0_24, %c0_25] : memref<1x128x128xf32, #tpu.memory_space<vmem>>, vector<1x128x128xf32>
      %31 = tpu.iota {dimensions = array<i32: 1>} : vector<1x128x1xi32>
      %c128_i32_26 = arith.constant 128 : i32
      %32 = arith.muli %arg2, %c128_i32_26 : i32
      %c0_i32_27 = arith.constant 0 : i32
      %33 = arith.addi %32, %c0_i32_27 : i32
      %34 = tpu.assume_multiple %33, 128 : i32
      %c0_28 = arith.constant 0 : index
      %35 = arith.index_cast %34 : i32 to index
      %36 = vector.load %arg8[%c0_28, %35] : memref<1x128xf32, #tpu.memory_space<vmem>>, vector<1x128xf32>
      %37 = vector.shape_cast %36 : vector<1x128xf32> to vector<1x1x128xf32>
      %38 = tpu.iota {dimensions = array<i32: 2>} : vector<1x1x128xi32>
      %c0_i32_29 = arith.constant 0 : i32
      %39 = vector.broadcast %c0_i32_29 : i32 to vector<1x1x128xi32>
      %40 = arith.addi %38, %39 : vector<1x1x128xi32>
      %41 = vector.broadcast %37 : vector<1x1x128xf32> to vector<1x128x128xf32>
      %42 = arith.cmpf ogt, %41, %30 : vector<1x128x128xf32>
      %43 = vector.broadcast %37 : vector<1x1x128xf32> to vector<1x128x128xf32>
      %44 = arith.cmpf oeq, %43, %30 : vector<1x128x128xf32>
      %45 = vector.broadcast %40 : vector<1x1x128xi32> to vector<1x128x128xi32>
      %46 = vector.broadcast %31 : vector<1x128x1xi32> to vector<1x128x128xi32>
      %47 = arith.cmpi slt, %45, %46 : vector<1x128x128xi32>
      %48 = arith.andi %44, %47 : vector<1x128x128xi1>
      %49 = arith.ori %42, %48 : vector<1x128x128xi1>
      %c0_30 = arith.constant 0 : index
      %c0_31 = arith.constant 0 : index
      %c0_32 = arith.constant 0 : index
      %50 = vector.load %arg11[%c0_30, %c0_31, %c0_32] : memref<1x128x128xi32, #tpu.memory_space<vmem>>, vector<1x128x128xi32>
      %51 = arith.extui %49 : vector<1x128x128xi1> to vector<1x128x128xi32>
      %52 = arith.addi %50, %51 : vector<1x128x128xi32>
      %c0_33 = arith.constant 0 : index
      %c0_34 = arith.constant 0 : index
      %c0_35 = arith.constant 0 : index
      %53 = vector.load %arg11[%c0_33, %c0_34, %c0_35] : memref<1x128x128xi32, #tpu.memory_space<vmem>>, vector<1x128x128xi32>
      tpu.vector_store %arg11[%c0_33, %c0_34, %c0_35], %52 {strides = array<i32>} : memref<1x128x128xi32, #tpu.memory_space<vmem>>, vector<1x128x128xi32>,
      %c0_36 = arith.constant 0 : index
      %c0_37 = arith.constant 0 : index
      %c0_38 = arith.constant 0 : index
      %54 = vector.load %arg11[%c0_36, %c0_37, %c0_38] : memref<1x128x128xi32, #tpu.memory_space<vmem>>, vector<1x128x128xi32>
      %cst = arith.constant dense<0> : vector<1x128xi32>
      %55 = vector.multi_reduction <add>, %54, %cst [2] : vector<1x128x128xi32> to vector<1x128xi32>
      %c0_39 = arith.constant 0 : index
      %c0_40 = arith.constant 0 : index
      %56 = vector.load %arg12[%c0_39, %c0_40] : memref<1x1xi32, #tpu.memory_space<vmem>>, vector<1x1xi32>
      %c3_i32 = arith.constant 3 : i32
      %57 = vector.broadcast %c3_i32 : i32 to vector<1x1xi32>
      %58 = arith.muli %56, %57 : vector<1x1xi32>
      %59 = tpu.iota {dimensions = array<i32: 1>} : vector<1x128xi32>
      %c128_i32_41 = arith.constant 128 : i32
      %60 = arith.muli %arg2, %c128_i32_41 : i32
      %61 = vector.broadcast %60 : i32 to vector<1x128xi32>
      %62 = arith.addi %59, %61 : vector<1x128xi32>
      %c16_i32 = arith.constant 16 : i32
      %63 = vector.broadcast %c16_i32 : i32 to vector<1x128xi32>
      %64 = arith.cmpi slt, %62, %63 : vector<1x128xi32>
      %65 = vector.broadcast %58 : vector<1x1xi32> to vector<1x128xi32>
      %66 = arith.cmpi slt, %55, %65 : vector<1x128xi32>
      %67 = arith.ori %3, %66 : vector<1x128xi1>
      %68 = arith.andi %67, %64 : vector<1x128xi1>
      %c0_42 = arith.constant 0 : index
      %69 = arith.index_cast %16 : i32 to index
      %70 = vector.load %arg9[%c0_42, %69] : memref<1x128xf32, #tpu.memory_space<vmem>>, vector<1x128xf32>
      %c0_43 = arith.constant 0 : index
      %c0_44 = arith.constant 0 : index
      %71 = vector.load %arg14[%c0_43, %c0_44] : memref<1x1xf32, #tpu.memory_space<vmem>>, vector<1x1xf32>
      %cst_45 = arith.constant 0.000000e+00 : f32
      %72 = vector.broadcast %cst_45 : f32 to vector<1x128xf32>
      %73 = arith.select %68, %70, %72 : vector<1x128xi1>, vector<1x128xf32>
      %74 = vector.shape_cast %73 : vector<1x128xf32> to vector<1x1x128xf32>
      %cst_46 = arith.constant dense<0.000000e+00> : vector<1xf32>
      %75 = vector.multi_reduction <add>, %74, %cst_46 [1, 2] : vector<1x1x128xf32> to vector<1xf32>
      %76 = vector.shape_cast %75 : vector<1xf32> to vector<1x1x1xf32>
      %77 = vector.extract %76[0, 0, 0] : f32 from vector<1x1x1xf32>
      %78 = vector.broadcast %77 : f32 to vector<1x1xf32>
      %79 = arith.addf %71, %78 : vector<1x1xf32>
      %c0_47 = arith.constant 0 : index
      %c0_48 = arith.constant 0 : index
      %80 = vector.load %arg14[%c0_47, %c0_48] : memref<1x1xf32, #tpu.memory_space<vmem>>, vector<1x1xf32>
      tpu.vector_store %arg14[%c0_47, %c0_48], %79 {strides = array<i32>} : memref<1x1xf32, #tpu.memory_space<vmem>>, vector<1x1xf32>,
      %c0_i32_49 = arith.constant 0 : i32
      %81 = arith.cmpi eq, %arg2, %c0_i32_49 : i32
      %82 = arith.extui %81 : i1 to i32
      %c0_i32_50 = arith.constant 0 : i32
      %83 = arith.cmpi ne, %82, %c0_i32_50 : i32
      scf.if %83 {
        %c0_51 = arith.constant 0 : index
        %c0_52 = arith.constant 0 : index
        %84 = vector.load %arg13[%c0_51, %c0_52] : memref<1x1xf32, #tpu.memory_space<vmem>>, vector<1x1xf32>
        %85 = vector.shape_cast %84 : vector<1x1xf32> to vector<1x1xf32>
        %86 = vector.broadcast %85 : vector<1x1xf32> to vector<1x128xf32>
        %c0_53 = arith.constant 0 : index
        %c0_54 = arith.constant 0 : index
        %c0_55 = arith.constant 0 : index
        %87 = vector.load %arg7[%c0_53, %c0_54, %c0_55] : memref<1x3x128xf32, #tpu.memory_space<vmem>>, vector<1x1x128xf32>
        %88 = vector.shape_cast %87 : vector<1x1x128xf32> to vector<1x128xf32>
        %89 = vector.shape_cast %86 : vector<1x128xf32> to vector<1x1x128xf32>
        tpu.vector_store %arg7[%c0_53, %c0_54, %c0_55], %89 {strides = array<i32>} : memref<1x3x128xf32, #tpu.memory_space<vmem>>, vector<1x1x128xf32>,
        %c0_56 = arith.constant 0 : index
        %c0_57 = arith.constant 0 : index
        %90 = vector.load %arg14[%c0_56, %c0_57] : memref<1x1xf32, #tpu.memory_space<vmem>>, vector<1x1xf32>
        %91 = vector.shape_cast %90 : vector<1x1xf32> to vector<1x1xf32>
        %92 = vector.broadcast %91 : vector<1x1xf32> to vector<1x128xf32>
        %c0_58 = arith.constant 0 : index
        %c1 = arith.constant 1 : index
        %c0_59 = arith.constant 0 : index
        %93 = vector.load %arg7[%c0_58, %c1, %c0_59] : memref<1x3x128xf32, #tpu.memory_space<vmem>>, vector<1x1x128xf32>
        %94 = vector.shape_cast %93 : vector<1x1x128xf32> to vector<1x128xf32>
        %95 = vector.shape_cast %92 : vector<1x128xf32> to vector<1x1x128xf32>
        tpu.vector_store %arg7[%c0_58, %c1, %c0_59], %95 {strides = array<i32>} : memref<1x3x128xf32, #tpu.memory_space<vmem>>, vector<1x1x128xf32>,
        %c0_60 = arith.constant 0 : index
        %c0_61 = arith.constant 0 : index
        %96 = vector.load %arg12[%c0_60, %c0_61] : memref<1x1xi32, #tpu.memory_space<vmem>>, vector<1x1xi32>
        %97 = arith.sitofp %96 : vector<1x1xi32> to vector<1x1xf32>
        %98 = vector.shape_cast %97 : vector<1x1xf32> to vector<1x1xf32>
        %99 = vector.broadcast %98 : vector<1x1xf32> to vector<1x128xf32>
        %c0_62 = arith.constant 0 : index
        %c2 = arith.constant 2 : index
        %c0_63 = arith.constant 0 : index
        %100 = vector.load %arg7[%c0_62, %c2, %c0_63] : memref<1x3x128xf32, #tpu.memory_space<vmem>>, vector<1x1x128xf32>
        %101 = vector.shape_cast %100 : vector<1x1x128xf32> to vector<1x128xf32>
        %102 = vector.shape_cast %99 : vector<1x128xf32> to vector<1x1x128xf32>
        tpu.vector_store %arg7[%c0_62, %c2, %c0_63], %102 {strides = array<i32>} : memref<1x3x128xf32, #tpu.memory_space<vmem>>, vector<1x1x128xf32>,
      } else {
      }
    } else {
    }
    return
  }
  func.func @transform_0(%arg0: i32, %arg1: i32, %arg2: i32) -> (i32, i32, i32) {
    %c1_i32 = arith.constant 1 : i32
    %0 = arith.subi %c1_i32, %arg1 : i32
    %1 = arith.muli %arg2, %0 : i32
    %c0_i32 = arith.constant 0 : i32
    %2 = arith.muli %c0_i32, %arg1 : i32
    %3 = arith.addi %1, %2 : i32
    %c0_i32_0 = arith.constant 0 : i32
    %c0_i32_1 = arith.constant 0 : i32
    return %arg0, %c0_i32_0, %3 : i32, i32, i32
  }
  func.func @transform_1(%arg0: i32, %arg1: i32, %arg2: i32) -> (i32, i32, i32) {
    %c0_i32 = arith.constant 0 : i32
    %c0_i32_0 = arith.constant 0 : i32
    return %arg0, %c0_i32, %arg2 : i32, i32, i32
  }
  func.func @transform_2(%arg0: i32, %arg1: i32, %arg2: i32) -> (i32, i32, i32) {
    %c1_i32 = arith.constant 1 : i32
    %0 = arith.subi %c1_i32, %arg1 : i32
    %1 = arith.muli %arg2, %0 : i32
    %c0_i32 = arith.constant 0 : i32
    %2 = arith.muli %c0_i32, %arg1 : i32
    %3 = arith.addi %1, %2 : i32
    %c0_i32_0 = arith.constant 0 : i32
    %c0_i32_1 = arith.constant 0 : i32
    return %arg0, %c0_i32_0, %3 : i32, i32, i32
  }
  func.func @transform_3(%arg0: i32, %arg1: i32, %arg2: i32) -> (i32, i32, i32) {
    %c1_i32 = arith.constant 1 : i32
    %0 = arith.subi %c1_i32, %arg1 : i32
    %1 = arith.muli %arg2, %0 : i32
    %c0_i32 = arith.constant 0 : i32
    %2 = arith.muli %c0_i32, %arg1 : i32
    %3 = arith.addi %1, %2 : i32
    %c0_i32_0 = arith.constant 0 : i32
    %c0_i32_1 = arith.constant 0 : i32
    return %arg0, %c0_i32_0, %3 : i32, i32, i32
  }
  func.func @transform_4(%arg0: i32, %arg1: i32, %arg2: i32) -> (i32, i32, i32) {
    %c0_i32 = arith.constant 0 : i32
    %c0_i32_0 = arith.constant 0 : i32
    %c0_i32_1 = arith.constant 0 : i32
    return %arg0, %c0_i32, %c0_i32_0 : i32, i32, i32
  }
}

</mosaic_0001>

<llo_original>
// kernel: tpu_custom_call.1
$region0: #{tpu_custom_call.1}
  #allocation0 [shape = 'u32[]', space=smem, size = 0x4, offset = 0x4, fixed_abs, tag = 'smem constant byte address 0x4 - core index']
  #allocation1 [shape = 'u32[144,128]{1,0:T(1,128)}', space=vmem, size = 0x12000, scoped, tag = 'internal scratch']
  #allocation2 [shape = 'f32[1,128]{1,0:T(1,128)}', space=vmem, size = 0x200, scoped, tag = 'scratch operand']
  #allocation3 [shape = 'f32[1,128]{1,0:T(1,128)}', space=vmem, size = 0x200, scoped, tag = 'scratch operand']
  #allocation4 [shape = 'f32[1,128,128]{2,1,0:T(8,128)}', space=vmem, size = 0x10000, scoped, tag = 'scratch operand']
  #allocation5 [shape = 's32[1,128,128]{2,1,0:T(8,128)}', space=vmem, size = 0x10000, scoped, tag = 'scratch operand']
  #allocation6 [shape = 's32[1,1]{1,0:T(1,128)}', space=vmem, size = 0x200, scoped, tag = 'scratch operand']
  #allocation7 [shape = 'f32[1,1]{1,0:T(1,128)}', space=vmem, size = 0x200, scoped, tag = 'scratch operand']
  #allocation8 [shape = 'f32[1,1]{1,0:T(1,128)}', space=vmem, size = 0x200, scoped, tag = 'scratch operand']
  %s0 = inlined_call_operand.vmem [shape: f32[2,5,128], index: 0, kind: input, shape index: {}]
  %s1 = inlined_call_operand.vmem [shape: s32[2,1,128], index: 1, kind: input, shape index: {}]
  %s2 = inlined_call_operand.vmem [shape: f32[2,4,128], index: 2, kind: input, shape index: {}]
  %s3 = inlined_call_operand.vmem [shape: f32[2,4,128], index: 3, kind: input, shape index: {}]
  %s4 = inlined_call_operand.vmem [shape: f32[2,3,128], index: 4, kind: output, shape index: {}]
  %s5 = sld [smem:[#allocation0]]
  $region79: #{tpu_custom_call.1} parent=0
    _
  %s7 = ssub.s32 1, %s5
  %s8 = scalar_select 0, %s7, %s5
  loop: start=0, step=1, limit=6
  $region2: #{tpu_custom_call.1} parent=0 // loop_pre_header
    _
  $region3: #{tpu_custom_call.1} parent=0 // loop_header
    %s10 = sphi 0, %s14
    %p11 = scmp.ge.s32.totalorder %s10, 6
    %s17 = sphi 0, %s36
    %s18 = sphi 0, %s32
    %s19 = sphi 0, %s28
    %s20 = sphi 0, %s17
    %s21 = sphi 0, %s18
    %s22 = sphi 0, %s19
    %s23 = sphi 0, %s20
    %s24 = sphi 0, %s21
    %s25 = sphi 0, %s22
    %s45 = sphi 0, %s47
    %s48 = sphi 0, %s45
    %s49 = sphi 0, %s48
    %s65 = sphi 0, %s49
    %s73 = sphi 0, %s75
    %s76 = sphi 0, %s73
    %s77 = sphi 0, %s76
    %s93 = sphi 0, %s77
    %s105 = sphi 0, %s107
    %s108 = sphi 0, %s105
    %s109 = sphi 0, %s108
    %s125 = sphi 0, %s109
    %s137 = sphi 0, %s139
    %s140 = sphi 0, %s137
    %s141 = sphi 0, %s140
    %s157 = sphi 0, %s141
    %s163 = sphi 0, %s165
    %s166 = sphi 0, %s163
    %s167 = sphi 0, %s166
    %s183 = sphi 0, %s167
  $region4: #{tpu_custom_call.1} parent=0 // loop_header_branch
    %13 = sbr.rel (%p11) target = $region8
  $region5: #{tpu_custom_call.1} parent=0 // loop_body
    %s15 = ssub.s32 %s10, 1
    %s16 = ssub.s32 %s10, 2
    %s26 = sadd.s32 1, %s19
    %p27 = scmp.ge.s32.totalorder %s26, 1
    %s28 = scalar_select %p27, 0, %s26
    %s29 = sadd.s32 1, %s18
    %s30 = scalar_select %p27, %s29, %s18
    %p31 = scmp.ge.s32.totalorder %s30, 2
    %s32 = scalar_select %p31, 0, %s30
    %s33 = sadd.s32 1, %s17
    %s34 = scalar_select %p31, %s33, %s17
    %p35 = scmp.ge.s32.totalorder %s34, 2
    %s36 = scalar_select %p35, 0, %s34
    %s37 = ssub.s32 1, %s18
    %s38 = smul.u32 %s19, %s37
    %s39 = ssub.s32 1, %s32
    %s40 = smul.u32 %s28, %s39
    %s41 = ssub.s32 %s17, %s36
    %s42 = ssub.s32 %s38, %s40
    %s43 = sor.u32 %s41, %s42
    %p44 = scmp.eq.s32.totalorder %s43, 0
    %s46 = sadd.s32 %s45, 1
    %s47 = scalar_select %p44, %s45, %s46
    %p50 = pneg %p44
    %p51 = scmp.eq.s32.totalorder %s10, 3
    %p52 = por %p50, %p51
    %p53 = scmp.ne.s32.totalorder %s45, %s48
    %p54 = scmp.eq.s32.totalorder %s10, 0
    %p55 = por %p53, %p54
    %p56 = scmp.ne.s32.totalorder %s45, %s48
    %p57 = scmp.eq.s32.totalorder %s15, 3
    %p58 = por %p56, %p57
    %p59 = scmp.ne.s32.totalorder %s48, %s49
    %p60 = scmp.eq.s32.totalorder %s15, 0
    %p61 = por %p59, %p60
    %p62 = scmp.ne.s32.totalorder %s48, %s49
    %p63 = scmp.eq.s32.totalorder %s16, 3
    %p64 = por %p62, %p63
    %p66 = scmp.ne.s32.totalorder %s49, %s65
    %p67 = scmp.eq.s32.totalorder %s16, 0
    %p68 = por %p66, %p67
    %s69 = ssub.s32 %s17, %s36
    %s70 = ssub.s32 %s19, %s28
    %s71 = sor.u32 %s69, %s70
    %p72 = scmp.eq.s32.totalorder %s71, 0
    %s74 = sadd.s32 %s73, 1
    %s75 = scalar_select %p72, %s73, %s74
    %p78 = pneg %p72
    %p79 = scmp.eq.s32.totalorder %s10, 3
    %p80 = por %p78, %p79
    %p81 = scmp.ne.s32.totalorder %s73, %s76
    %p82 = scmp.eq.s32.totalorder %s10, 0
    %p83 = por %p81, %p82
    %p84 = scmp.ne.s32.totalorder %s73, %s76
    %p85 = scmp.eq.s32.totalorder %s15, 3
    %p86 = por %p84, %p85
    %p87 = scmp.ne.s32.totalorder %s76, %s77
    %p88 = scmp.eq.s32.totalorder %s15, 0
    %p89 = por %p87, %p88
    %p90 = scmp.ne.s32.totalorder %s76, %s77
    %p91 = scmp.eq.s32.totalorder %s16, 3
    %p92 = por %p90, %p91
    %p94 = scmp.ne.s32.totalorder %s77, %s93
    %p95 = scmp.eq.s32.totalorder %s16, 0
    %p96 = por %p94, %p95
    %s97 = ssub.s32 1, %s18
    %s98 = smul.u32 %s19, %s97
    %s99 = ssub.s32 1, %s32
    %s100 = smul.u32 %s28, %s99
    %s101 = ssub.s32 %s17, %s36
    %s102 = ssub.s32 %s98, %s100
    %s103 = sor.u32 %s101, %s102
    %p104 = scmp.eq.s32.totalorder %s103, 0
    %s106 = sadd.s32 %s105, 1
    %s107 = scalar_select %p104, %s105, %s106
    %p110 = pneg %p104
    %p111 = scmp.eq.s32.totalorder %s10, 3
    %p112 = por %p110, %p111
    %p113 = scmp.ne.s32.totalorder %s105, %s108
    %p114 = scmp.eq.s32.totalorder %s10, 0
    %p115 = por %p113, %p114
    %p116 = scmp.ne.s32.totalorder %s105, %s108
    %p117 = scmp.eq.s32.totalorder %s15, 3
    %p118 = por %p116, %p117
    %p119 = scmp.ne.s32.totalorder %s108, %s109
    %p120 = scmp.eq.s32.totalorder %s15, 0
    %p121 = por %p119, %p120
    %p122 = scmp.ne.s32.totalorder %s108, %s109
    %p123 = scmp.eq.s32.totalorder %s16, 3
    %p124 = por %p122, %p123
    %p126 = scmp.ne.s32.totalorder %s109, %s125
    %p127 = scmp.eq.s32.totalorder %s16, 0
    %p128 = por %p126, %p127
    %s129 = ssub.s32 1, %s18
    %s130 = smul.u32 %s19, %s129
    %s131 = ssub.s32 1, %s32
    %s132 = smul.u32 %s28, %s131
    %s133 = ssub.s32 %s17, %s36
    %s134 = ssub.s32 %s130, %s132
    %s135 = sor.u32 %s133, %s134
    %p136 = scmp.eq.s32.totalorder %s135, 0
    %s138 = sadd.s32 %s137, 1
    %s139 = scalar_select %p136, %s137, %s138
    %p142 = pneg %p136
    %p143 = scmp.eq.s32.totalorder %s10, 3
    %p144 = por %p142, %p143
    %p145 = scmp.ne.s32.totalorder %s137, %s140
    %p146 = scmp.eq.s32.totalorder %s10, 0
    %p147 = por %p145, %p146
    %p148 = scmp.ne.s32.totalorder %s137, %s140
    %p149 = scmp.eq.s32.totalorder %s15, 3
    %p150 = por %p148, %p149
    %p151 = scmp.ne.s32.totalorder %s140, %s141
    %p152 = scmp.eq.s32.totalorder %s15, 0
    %p153 = por %p151, %p152
    %p154 = scmp.ne.s32.totalorder %s140, %s141
    %p155 = scmp.eq.s32.totalorder %s16, 3
    %p156 = por %p154, %p155
    %p158 = scmp.ne.s32.totalorder %s141, %s157
    %p159 = scmp.eq.s32.totalorder %s16, 0
    %p160 = por %p158, %p159
    %s161 = ssub.s32 %s17, %s36
    %p162 = scmp.eq.s32.totalorder %s161, 0
    %s164 = sadd.s32 %s163, 1
    %s165 = scalar_select %p162, %s163, %s164
    %p168 = pneg %p162
    %p169 = scmp.eq.s32.totalorder %s10, 3
    %p170 = por %p168, %p169
    %p171 = scmp.ne.s32.totalorder %s163, %s166
    %p172 = scmp.eq.s32.totalorder %s10, 0
    %p173 = por %p171, %p172
    %p174 = scmp.ne.s32.totalorder %s163, %s166
    %p175 = scmp.eq.s32.totalorder %s15, 3
    %p176 = por %p174, %p175
    %p177 = scmp.ne.s32.totalorder %s166, %s167
    %p178 = scmp.eq.s32.totalorder %s15, 0
    %p179 = por %p177, %p178
    %p180 = scmp.ne.s32.totalorder %s166, %s167
    %p181 = scmp.eq.s32.totalorder %s16, 3
    %p182 = por %p180, %p181
    %p184 = scmp.ne.s32.totalorder %s167, %s183
    %p185 = scmp.eq.s32.totalorder %s16, 0
    %p186 = por %p184, %p185
    %p187 = scmp.le.s32.totalorder 1, %s10
    %p188 = scmp.lt.s32.totalorder %s10, 5
    %p189 = pnand %p187, %p188
    %p190 = pneg %p189
    // Predicated region
    $region9: #{tpu_custom_call.1} parent=5 // pred_check
      _
    $region10: #{tpu_custom_call.1} parent=5 // pred_check_branch
      %192 = sbr.rel (%p189) target = $region12
    $region11: #{tpu_custom_call.1} parent=5 // pred_region
      %s193 = ssub.s32 %s10, 1
    $region12: #{tpu_custom_call.1} parent=5 // pred_fallthru
      _
    %p194 = scmp.lt.s32.totalorder %s10, 4
    // Predicated region
    $region13: #{tpu_custom_call.1} parent=5 // pred_check
      %p195 = pneg %p194
    $region14: #{tpu_custom_call.1} parent=5 // pred_check_branch
      %197 = sbr.rel (%p195) target = $region16
    $region15: #{tpu_custom_call.1} parent=5 // pred_region
      // Predicated region
      $region17: #{tpu_custom_call.1} parent=15 // pred_check
        %p198 = pneg %p55
      $region18: #{tpu_custom_call.1} parent=15 // pred_check_branch
        %200 = sbr.rel (%p198) target = $region20
      $region19: #{tpu_custom_call.1} parent=15 // pred_region
        %s201 = ssub.s32 1, %s18
        %s202 = smul.u32 %s19, %s201
        %p203 = scmp.lt.s32.totalorder %s17, 1
        %s204 = scalar_select %p203, %s17, 1
        %p205 = scmp.lt.s32.totalorder %s202, 0
        %s206 = scalar_select %p205, %s202, 0
        %s207 = sadd.s32 %s206, %s204
        %s208 = smul.addr %s207, 8
        %s209 = scalar_lea.vmem %s0, %s208
        %s210 = ssub.s32 1, %s18
        %s211 = smul.u32 %s19, %s210
      $region20: #{tpu_custom_call.1} parent=15 // pred_fallthru
        _
      // Predicated region
      $region21: #{tpu_custom_call.1} parent=15 // pred_check
        %p212 = pneg %p83
      $region22: #{tpu_custom_call.1} parent=15 // pred_check_branch
        %214 = sbr.rel (%p212) target = $region24
      $region23: #{tpu_custom_call.1} parent=15 // pred_region
        %p215 = scmp.lt.s32.totalorder %s17, 1
        %s216 = scalar_select %p215, %s17, 1
        %p217 = scmp.lt.s32.totalorder %s19, 0
        %s218 = scalar_select %p217, %s19, 0
        %s219 = sadd.s32 %s218, %s216
        %s220 = scalar_lea.vmem %s1, %s219
      $region24: #{tpu_custom_call.1} parent=15 // pred_fallthru
        _
      // Predicated region
      $region25: #{tpu_custom_call.1} parent=15 // pred_check
        %p221 = pneg %p115
      $region26: #{tpu_custom_call.1} parent=15 // pred_check_branch
        %223 = sbr.rel (%p221) target = $region28
      $region27: #{tpu_custom_call.1} parent=15 // pred_region
        %s224 = ssub.s32 1, %s18
        %s225 = smul.u32 %s19, %s224
        %p226 = scmp.lt.s32.totalorder %s17, 1
        %s227 = scalar_select %p226, %s17, 1
        %p228 = scmp.lt.s32.totalorder %s225, 0
        %s229 = scalar_select %p228, %s225, 0
        %s230 = sadd.s32 %s229, %s227
        %s231 = smul.addr %s230, 4
        %s232 = scalar_lea.vmem %s2, %s231
        %s233 = ssub.s32 1, %s18
        %s234 = smul.u32 %s19, %s233
      $region28: #{tpu_custom_call.1} parent=15 // pred_fallthru
        _
      // Predicated region
      $region29: #{tpu_custom_call.1} parent=15 // pred_check
        %p235 = pneg %p147
      $region30: #{tpu_custom_call.1} parent=15 // pred_check_branch
        %237 = sbr.rel (%p235) target = $region32
      $region31: #{tpu_custom_call.1} parent=15 // pred_region
        %s238 = ssub.s32 1, %s18
        %s239 = smul.u32 %s19, %s238
        %p240 = scmp.lt.s32.totalorder %s17, 1
        %s241 = scalar_select %p240, %s17, 1
        %p242 = scmp.lt.s32.totalorder %s239, 0
        %s243 = scalar_select %p242, %s239, 0
        %s244 = sadd.s32 %s243, %s241
        %s245 = smul.addr %s244, 4
        %s246 = scalar_lea.vmem %s3, %s245
        %s247 = ssub.s32 1, %s18
        %s248 = smul.u32 %s19, %s247
      $region32: #{tpu_custom_call.1} parent=15 // pred_fallthru
        _
    $region16: #{tpu_custom_call.1} parent=5 // pred_fallthru
      _
    %p249 = scmp.le.s32.totalorder 1, %s10
    %p250 = scmp.lt.s32.totalorder %s10, 5
    %p251 = pnand %p249, %p250
    %p252 = pneg %p251
    // Predicated region
    $region33: #{tpu_custom_call.1} parent=5 // pred_check
      _
    $region34: #{tpu_custom_call.1} parent=5 // pred_check_branch
      %254 = sbr.rel (%p251) target = $region36
    $region35: #{tpu_custom_call.1} parent=5 // pred_region
      %s255 = ssub.s32 %s10, 1
      %s256 = ssub.s32 1, %s21
      %s257 = smul.u32 %s22, %s256
      %p258 = scmp.lt.s32.totalorder %s20, 1
      %s259 = scalar_select %p258, %s20, 1
      %p260 = scmp.lt.s32.totalorder %s257, 0
      %s261 = scalar_select %p260, %s257, 0
      %s262 = sadd.s32 %s261, %s259
      %s263 = smul.addr %s262, 8
      %s264 = scalar_lea.vmem %s0, %s263
      %p265 = pneg %p61
      %p266 = pneg %p58
      %p267 = scmp.lt.s32.totalorder %s20, 1
      %s268 = scalar_select %p267, %s20, 1
      %p269 = scmp.lt.s32.totalorder %s22, 0
      %s270 = scalar_select %p269, %s22, 0
      %s271 = sadd.s32 %s270, %s268
      %s272 = scalar_lea.vmem %s1, %s271
      %p273 = pneg %p89
      %p274 = pneg %p86
      %s275 = ssub.s32 1, %s21
      %s276 = smul.u32 %s22, %s275
      %p277 = scmp.lt.s32.totalorder %s20, 1
      %s278 = scalar_select %p277, %s20, 1
      %p279 = scmp.lt.s32.totalorder %s276, 0
      %s280 = scalar_select %p279, %s276, 0
      %s281 = sadd.s32 %s280, %s278
      %s282 = smul.addr %s281, 4
      %s283 = scalar_lea.vmem %s2, %s282
      %p284 = pneg %p121
      %p285 = pneg %p118
      %s286 = ssub.s32 1, %s21
      %s287 = smul.u32 %s22, %s286
      %p288 = scmp.lt.s32.totalorder %s20, 1
      %s289 = scalar_select %p288, %s20, 1
      %p290 = scmp.lt.s32.totalorder %s287, 0
      %s291 = scalar_select %p290, %s287, 0
      %s292 = sadd.s32 %s291, %s289
      %s293 = smul.addr %s292, 4
      %s294 = scalar_lea.vmem %s3, %s293
      %p295 = pneg %p153
      %p296 = pneg %p150
      %p297 = pneg %p179
      %p298 = pneg %p176
      %p299 = scmp.lt.s32.totalorder %s20, 1
      %s300 = scalar_select %p299, %s20, 1
      %s301 = smul.addr %s300, 4
      %s302 = scalar_lea.vmem %s4, %s301
      %s303 = ssub.s32 1, %s21
      %s304 = smul.u32 %s22, %s303
      %p305 = scmp.lt.s32.totalorder %s20, 1
      %s306 = scalar_select %p305, %s20, 1
      %p307 = scmp.lt.s32.totalorder %s304, 0
      %s308 = scalar_select %p307, %s304, 0
      %s309 = sadd.s32 %s308, %s306
      %s310 = smul.addr %s309, 8
      %s311 = scalar_lea.vmem %s0, %s310
      %s312 = ssub.s32 1, %s21
      %s313 = smul.u32 %s22, %s312
      %p314 = scmp.lt.s32.totalorder %s20, 1
      %s315 = scalar_select %p314, %s20, 1
      %p316 = scmp.lt.s32.totalorder %s22, 0
      %s317 = scalar_select %p316, %s22, 0
      %s318 = sadd.s32 %s317, %s315
      %s319 = scalar_lea.vmem %s1, %s318
      %s320 = ssub.s32 1, %s21
      %s321 = smul.u32 %s22, %s320
      %p322 = scmp.lt.s32.totalorder %s20, 1
      %s323 = scalar_select %p322, %s20, 1
      %p324 = scmp.lt.s32.totalorder %s321, 0
      %s325 = scalar_select %p324, %s321, 0
      %s326 = sadd.s32 %s325, %s323
      %s327 = smul.addr %s326, 4
      %s328 = scalar_lea.vmem %s2, %s327
      %s329 = ssub.s32 1, %s21
      %s330 = smul.u32 %s22, %s329
      %s331 = ssub.s32 1, %s21
      %s332 = smul.u32 %s22, %s331
      %p333 = scmp.lt.s32.totalorder %s20, 1
      %s334 = scalar_select %p333, %s20, 1
      %p335 = scmp.lt.s32.totalorder %s332, 0
      %s336 = scalar_select %p335, %s332, 0
      %s337 = sadd.s32 %s336, %s334
      %s338 = smul.addr %s337, 4
      %s339 = scalar_lea.vmem %s3, %s338
      %s340 = ssub.s32 1, %s21
      %s341 = smul.u32 %s22, %s340
      %p342 = scmp.lt.s32.totalorder %s20, 1
      %s343 = scalar_select %p342, %s20, 1
      %s344 = smul.addr %s343, 4
      %s345 = scalar_lea.vmem %s4, %s344
      %v346 = vld [vmem:[%s319] sm:$0x1]
      %vm347 = vcmp.gt.s32.totalorder %v346, 0
      %p348 = scmp.eq.s32.totalorder %s21, 0
      %p349 = scmp.eq.s32.totalorder %s22, 0
      %p350 = pnand %p348, %p349
      %p351 = pneg %p350
      // Predicated region
      $region37: #{tpu_custom_call.1} parent=35 // pred_check
        _
      $region38: #{tpu_custom_call.1} parent=35 // pred_check_branch
        %353 = sbr.rel (%p350) target = $region40
      $region39: #{tpu_custom_call.1} parent=35 // pred_region
        %vm354 = vcmask 0
        %355 = vst.msk [vmem:[#allocation6] sm:$0x1] %vm354, 0
        %356 = vst.msk [vmem:[#allocation7] sm:$0x1] %vm354, 0.0
        %357 = vst.msk [vmem:[#allocation8] sm:$0x1] %vm354, 0.0
      $region40: #{tpu_custom_call.1} parent=35 // pred_fallthru
        _
      // Predicated region
      $region41: #{tpu_custom_call.1} parent=35 // pred_check
        %p358 = pneg %p348
      $region42: #{tpu_custom_call.1} parent=35 // pred_check_branch
        %360 = sbr.rel (%p358) target = $region44
      $region43: #{tpu_custom_call.1} parent=35 // pred_region
        %v361 = vld [vmem:[%s311] sm:$0x1f]
        %vm362 = vcmask 1044480
        %v363 = vsel %vm362, %v361, -inf
        %v364 = vrot.slane %v363, 4
        %v365 = vmax.f32 %v363, %v364
        %v366 = vrot.slane %v365, 2
        %v367 = vmax.f32 %v365, %v366
        %v368 = vrot.slane %v367, 1
        %v369 = vmax.f32 %v367, %v368
        %v370 = vsub.f32 %v361, %v369
        %v371 = vmul.f32 %v370, 1.442695
        %v372 = vpow.pop %v371
        %v373 = vsel %vm362, %v372, 0.0
        %v374 = vrot.slane %v373, 4
        %v375 = vadd.f32 %v373, %v374
        %v376 = vrot.slane %v375, 2
        %v377 = vadd.f32 %v375, %v376
        %v378 = vrot.slane %v377, 1
        %v379 = vadd.f32 %v377, %v378
        %v380 = vlog2.pop %v379
        %v381 = vmul.f32 %v380, 0.6931472
        %v382 = vadd.f32 %v381, %v369
        %v383 = vsub.f32 %v382, %v361
        %v384 = vlaneseq
        %v385 = vshrl.u32 %v384, 7
        %v386 = vlaneseq
        %v387 = vshrl.u32 %v386, 7
        %v388 = vsub.s32 0, %v387
        %v389 = vrot.slane %v346, %v388
        %vm390 = vcmp.eq.s32.totalorder %v385, %v389
        %v391 = vsel %vm390, %v361, 0.0
        %v392 = vsel %vm362, %v391, 0.0
        %v393 = vrot.slane %v392, 4
        %v394 = vadd.f32 %v392, %v393
        %v395 = vrot.slane %v394, 2
        %v396 = vadd.f32 %v394, %v395
        %v397 = vrot.slane %v396, 1
        %v398 = vadd.f32 %v396, %v397
        %v399 = vsub.f32 %v382, %v398
        %s400 = smul.u32 %s22, 128
        %v401 = vlaneseq
        %v402 = vand.u32 %v401, 127
        %v403 = vstv %s400
        %v404 = vadd.s32 %v402, %v403
        %vm405 = vcmp.ge.s32.totalorder %v404, 16
        %vm406 = vmor %vm347, %vm405
        %v407 = vsel %vm406, -inf, %v383
        %s408 = sshra.s32 %s400, 7
        %s409 = sand.u32 %s400, 127
        %s410 = scalar_lea.vmem [#allocation2], %s408
        %411 = vst [vmem:[%s410] sm:$0x1] %v407
        %s412 = scalar_lea.vmem [#allocation3], %s408
        %413 = vst [vmem:[%s412] sm:$0x1] %v399
        %v414 = vld [vmem:[#allocation6] sm:$0x1]
        %v415 = vsel %vm347, 1, 0
        %vm416 = vcmask 1040384
        %v417 = vsel %vm416, %v415, 0
        %v418 = vand.u32 %v417, 65535
        %v419 = vshrl.u32 %v417, 16
        %v420 = vcvt.s32.f32 %v418
        %v421 = vcvt.s32.f32 %v419
        %422 = vadd.xlane.f32.xlu0 %v420
        %v423 = vpop.xlane.xlu0 %422
        %424 = vadd.xlane.f32.xlu0 %v421
        %v425 = vpop.xlane.xlu0 %424
        %v426 = vcvt.f32.s32 %v423
        %v427 = vcvt.f32.s32 %v425
        %v428 = vshll.u32 %v427, 16
        %v429 = vadd.s32 %v428, %v426
        %v430 = vrot.slane %v429, 4
        %v431 = vadd.s32 %v429, %v430
        %v432 = vrot.slane %v431, 2
        %v433 = vadd.s32 %v431, %v432
        %v434 = vrot.slane %v433, 1
        %v435 = vadd.s32 %v433, %v434
        %s436 = vtos %v435
        %v437 = vstv %s436
        %v438 = vadd.s32 %v414, %v437
        %vm439 = vcmask 0
        %440 = vst.msk [vmem:[#allocation6] sm:$0x1] %vm439, %v438
        %v441 = vld [vmem:[%s328] sm:$0xf]
        %v442 = vld [vmem:[%s339] sm:$0xf]
        %v443 = vsub.f32 %v441, %v442
        %v444 = vand.u32 2147483647, %v443
        %vm445 = vcmp.lt.f32.partialorder %v444, 1.0
        %v446 = vmul.f32 %v444, 0.5
        %v447 = vmul.f32 %v446, %v444
        %v448 = vsub.f32 %v444, 0.5
        %v449 = vsel %vm445, %v447, %v448
        %vm450 = vcmask 1043456
        %v451 = vsel %vm450, %v449, 0.0
        %v452 = vrot.slane %v451, 4
        %v453 = vadd.f32 %v451, %v452
        %v454 = vrot.slane %v453, 2
        %v455 = vadd.f32 %v453, %v454
        %v456 = vrot.slane %v455, 1
        %v457 = vadd.f32 %v455, %v456
        %v458 = vld [vmem:[#allocation7] sm:$0x1]
        %v459 = vsel %vm347, %v457, 0.0
        %v460 = vsel %vm416, %v459, 0.0
        %461 = vadd.xlane.f32.xlu0 %v460
        %v462 = vpop.xlane.xlu0 %461
        %v463 = vrot.slane %v462, 4
        %v464 = vadd.f32 %v462, %v463
        %v465 = vrot.slane %v464, 2
        %v466 = vadd.f32 %v464, %v465
        %v467 = vrot.slane %v466, 1
        %v468 = vadd.f32 %v466, %v467
        %s469 = vtos %v468
        %v470 = vstv %s469
        %v471 = vadd.f32 %v458, %v470
        %472 = vst.msk [vmem:[#allocation7] sm:$0x1] %vm439, %v471
      $region44: #{tpu_custom_call.1} parent=35 // pred_fallthru
        _
      %p473 = scmp.eq.s32.totalorder %s21, 1
      // Predicated region
      $region45: #{tpu_custom_call.1} parent=35 // pred_check
        %p474 = pneg %p473
      $region46: #{tpu_custom_call.1} parent=35 // pred_check_branch
        %476 = sbr.rel (%p474) target = $region48
      $region47: #{tpu_custom_call.1} parent=35 // pred_region
        %s477 = smul.u32 %s22, 128
        %s478 = sshra.s32 %s477, 7
        %s479 = sand.u32 %s477, 127
        %s480 = scalar_lea.vmem [#allocation2], %s478
        %v481 = vld [vmem:[%s480] sm:$0x1]
        %v482 = vlaneseq
        %v483 = vshrl.u32 %v482, 7
        %v484 = vsub.s32 0, %v483
        %v485 = vrot.slane %v481, %v484
        %487 = vbcast.lane.b32.xlu0 %v485, 256
        %v488 = vpop.permute.xlu0 %487
        %s490 = sor.u32 256, 8
        %491 = vbcast.lane.b32.xlu0 %v485, %s490
        %v492 = vpop.permute.xlu0 %491
        %s494 = sor.u32 256, 16
        %495 = vbcast.lane.b32.xlu0 %v485, %s494
        %v496 = vpop.permute.xlu0 %495
        %s498 = sor.u32 256, 24
        %499 = vbcast.lane.b32.xlu0 %v485, %s498
        %v500 = vpop.permute.xlu0 %499
        %s502 = sor.u32 256, 32
        %503 = vbcast.lane.b32.xlu0 %v485, %s502
        %v504 = vpop.permute.xlu0 %503
        %s506 = sor.u32 256, 40
        %507 = vbcast.lane.b32.xlu0 %v485, %s506
        %v508 = vpop.permute.xlu0 %507
        %s510 = sor.u32 256, 48
        %511 = vbcast.lane.b32.xlu0 %v485, %s510
        %v512 = vpop.permute.xlu0 %511
        %s514 = sor.u32 256, 56
        %515 = vbcast.lane.b32.xlu0 %v485, %s514
        %v516 = vpop.permute.xlu0 %515
        %s518 = sor.u32 256, 64
        %519 = vbcast.lane.b32.xlu0 %v485, %s518
        %v520 = vpop.permute.xlu0 %519
        %s522 = sor.u32 256, 72
        %523 = vbcast.lane.b32.xlu0 %v485, %s522
        %v524 = vpop.permute.xlu0 %523
        %s526 = sor.u32 256, 80
        %527 = vbcast.lane.b32.xlu0 %v485, %s526
        %v528 = vpop.permute.xlu0 %527
        %s530 = sor.u32 256, 88
        %531 = vbcast.lane.b32.xlu0 %v485, %s530
        %v532 = vpop.permute.xlu0 %531
        %s534 = sor.u32 256, 96
        %535 = vbcast.lane.b32.xlu0 %v485, %s534
        %v536 = vpop.permute.xlu0 %535
        %s538 = sor.u32 256, 104
        %539 = vbcast.lane.b32.xlu0 %v485, %s538
        %v540 = vpop.permute.xlu0 %539
        %s542 = sor.u32 256, 112
        %543 = vbcast.lane.b32.xlu0 %v485, %s542
        %v544 = vpop.permute.xlu0 %543
        %s546 = sor.u32 256, 120
        %547 = vbcast.lane.b32.xlu0 %v485, %s546
        %v548 = vpop.permute.xlu0 %547
        %549 = vst [vmem:[#allocation4] sm:$0xff] %v488
        %550 = vst [vmem:[#allocation4 + $0x8] sm:$0xff] %v492
        %551 = vst [vmem:[#allocation4 + $0x10] sm:$0xff] %v496
        %552 = vst [vmem:[#allocation4 + $0x18] sm:$0xff] %v500
        %553 = vst [vmem:[#allocation4 + $0x20] sm:$0xff] %v504
        %554 = vst [vmem:[#allocation4 + $0x28] sm:$0xff] %v508
        %555 = vst [vmem:[#allocation4 + $0x30] sm:$0xff] %v512
        %556 = vst [vmem:[#allocation4 + $0x38] sm:$0xff] %v516
        %557 = vst [vmem:[#allocation4 + $0x40] sm:$0xff] %v520
        %558 = vst [vmem:[#allocation4 + $0x48] sm:$0xff] %v524
        %559 = vst [vmem:[#allocation4 + $0x50] sm:$0xff] %v528
        %560 = vst [vmem:[#allocation4 + $0x58] sm:$0xff] %v532
        %561 = vst [vmem:[#allocation4 + $0x60] sm:$0xff] %v536
        %562 = vst [vmem:[#allocation4 + $0x68] sm:$0xff] %v540
        %563 = vst [vmem:[#allocation4 + $0x70] sm:$0xff] %v544
        %564 = vst [vmem:[#allocation4 + $0x78] sm:$0xff] %v548
        %565 = vst [vmem:[#allocation5] sm:$0xff] 0
        %566 = vst [vmem:[#allocation5 + $0x8] sm:$0xff] 0
        %567 = vst [vmem:[#allocation5 + $0x10] sm:$0xff] 0
        %568 = vst [vmem:[#allocation5 + $0x18] sm:$0xff] 0
        %569 = vst [vmem:[#allocation5 + $0x20] sm:$0xff] 0
        %570 = vst [vmem:[#allocation5 + $0x28] sm:$0xff] 0
        %571 = vst [vmem:[#allocation5 + $0x30] sm:$0xff] 0
        %572 = vst [vmem:[#allocation5 + $0x38] sm:$0xff] 0
        %573 = vst [vmem:[#allocation5 + $0x40] sm:$0xff] 0
        %574 = vst [vmem:[#allocation5 + $0x48] sm:$0xff] 0
        %575 = vst [vmem:[#allocation5 + $0x50] sm:$0xff] 0
        %576 = vst [vmem:[#allocation5 + $0x58] sm:$0xff] 0
        %577 = vst [vmem:[#allocation5 + $0x60] sm:$0xff] 0
        %578 = vst [vmem:[#allocation5 + $0x68] sm:$0xff] 0
        %579 = vst [vmem:[#allocation5 + $0x70] sm:$0xff] 0
        %580 = vst [vmem:[#allocation5 + $0x78] sm:$0xff] 0
        // While loop
        $region49: #{tpu_custom_call.1} parent=47 // loop_pre_header
          _
        $region50: #{tpu_custom_call.1} parent=47 // loop_header
          %s582 = sphi 0, %s584
          %p583 = scmp.ge.s32.totalorder %s582, %s22
        $region51: #{tpu_custom_call.1} parent=47 // loop_header_branch
          %586 = sbr.rel (%p583) target = $region55
        $region52: #{tpu_custom_call.1} parent=47 // loop_body
          %s587 = smul.u32 %s582, 128
          %s588 = sshra.s32 %s587, 7
          %s589 = sand.u32 %s587, 127
          %s590 = scalar_lea.vmem [#allocation2], %s588
          %v591 = vld [vmem:[%s590] sm:$0x1]
          %v592 = vld [vmem:[#allocation4] sm:$0xff]
          %v593 = vld [vmem:[#allocation4 + $0x8] sm:$0xff]
          %v594 = vld [vmem:[#allocation4 + $0x10] sm:$0xff]
          %v595 = vld [vmem:[#allocation4 + $0x18] sm:$0xff]
          %v596 = vld [vmem:[#allocation4 + $0x20] sm:$0xff]
          %v597 = vld [vmem:[#allocation4 + $0x28] sm:$0xff]
          %v598 = vld [vmem:[#allocation4 + $0x30] sm:$0xff]
          %v599 = vld [vmem:[#allocation4 + $0x38] sm:$0xff]
          %v600 = vld [vmem:[#allocation4 + $0x40] sm:$0xff]
          %v601 = vld [vmem:[#allocation4 + $0x48] sm:$0xff]
          %v602 = vld [vmem:[#allocation4 + $0x50] sm:$0xff]
          %v603 = vld [vmem:[#allocation4 + $0x58] sm:$0xff]
          %v604 = vld [vmem:[#allocation4 + $0x60] sm:$0xff]
          %v605 = vld [vmem:[#allocation4 + $0x68] sm:$0xff]
          %v606 = vld [vmem:[#allocation4 + $0x70] sm:$0xff]
          %v607 = vld [vmem:[#allocation4 + $0x78] sm:$0xff]
          %v609 = vlaneseq
          %v610 = vshrl.u32 %v609, 7
          %v611 = vsub.s32 0, %v610
          %v612 = vrot.slane %v591, %v611
          %vm614 = vcmp.ge.f32.partialorder %v612, %v592
          %vm615 = vcmp.ge.f32.partialorder %v612, %v593
          %vm616 = vcmp.ge.f32.partialorder %v612, %v594
          %vm617 = vcmp.ge.f32.partialorder %v612, %v595
          %vm618 = vcmp.ge.f32.partialorder %v612, %v596
          %vm619 = vcmp.ge.f32.partialorder %v612, %v597
          %vm620 = vcmp.ge.f32.partialorder %v612, %v598
          %vm621 = vcmp.ge.f32.partialorder %v612, %v599
          %vm622 = vcmp.ge.f32.partialorder %v612, %v600
          %vm623 = vcmp.ge.f32.partialorder %v612, %v601
          %vm624 = vcmp.ge.f32.partialorder %v612, %v602
          %vm625 = vcmp.ge.f32.partialorder %v612, %v603
          %vm626 = vcmp.ge.f32.partialorder %v612, %v604
          %vm627 = vcmp.ge.f32.partialorder %v612, %v605
          %vm628 = vcmp.ge.f32.partialorder %v612, %v606
          %vm629 = vcmp.ge.f32.partialorder %v612, %v607
          %v630 = vld [vmem:[#allocation5] sm:$0xff]
          %v631 = vld [vmem:[#allocation5 + $0x8] sm:$0xff]
          %v632 = vld [vmem:[#allocation5 + $0x10] sm:$0xff]
          %v633 = vld [vmem:[#allocation5 + $0x18] sm:$0xff]
          %v634 = vld [vmem:[#allocation5 + $0x20] sm:$0xff]
          %v635 = vld [vmem:[#allocation5 + $0x28] sm:$0xff]
          %v636 = vld [vmem:[#allocation5 + $0x30] sm:$0xff]
          %v637 = vld [vmem:[#allocation5 + $0x38] sm:$0xff]
          %v638 = vld [vmem:[#allocation5 + $0x40] sm:$0xff]
          %v639 = vld [vmem:[#allocation5 + $0x48] sm:$0xff]
          %v640 = vld [vmem:[#allocation5 + $0x50] sm:$0xff]
          %v641 = vld [vmem:[#allocation5 + $0x58] sm:$0xff]
          %v642 = vld [vmem:[#allocation5 + $0x60] sm:$0xff]
          %v643 = vld [vmem:[#allocation5 + $0x68] sm:$0xff]
          %v644 = vld [vmem:[#allocation5 + $0x70] sm:$0xff]
          %v645 = vld [vmem:[#allocation5 + $0x78] sm:$0xff]
          %v646 = vsel %vm614, 1, 0
          %v647 = vsel %vm615, 1, 0
          %v648 = vsel %vm616, 1, 0
          %v649 = vsel %vm617, 1, 0
          %v650 = vsel %vm618, 1, 0
          %v651 = vsel %vm619, 1, 0
          %v652 = vsel %vm620, 1, 0
          %v653 = vsel %vm621, 1, 0
          %v654 = vsel %vm622, 1, 0
          %v655 = vsel %vm623, 1, 0
          %v656 = vsel %vm624, 1, 0
          %v657 = vsel %vm625, 1, 0
          %v658 = vsel %vm626, 1, 0
          %v659 = vsel %vm627, 1, 0
          %v660 = vsel %vm628, 1, 0
          %v661 = vsel %vm629, 1, 0
          %v662 = vadd.s32 %v630, %v646
          %v663 = vadd.s32 %v631, %v647
          %v664 = vadd.s32 %v632, %v648
          %v665 = vadd.s32 %v633, %v649
          %v666 = vadd.s32 %v634, %v650
          %v667 = vadd.s32 %v635, %v651
          %v668 = vadd.s32 %v636, %v652
          %v669 = vadd.s32 %v637, %v653
          %v670 = vadd.s32 %v638, %v654
          %v671 = vadd.s32 %v639, %v655
          %v672 = vadd.s32 %v640, %v656
          %v673 = vadd.s32 %v641, %v657
          %v674 = vadd.s32 %v642, %v658
          %v675 = vadd.s32 %v643, %v659
          %v676 = vadd.s32 %v644, %v660
          %v677 = vadd.s32 %v645, %v661
          %678 = vst [vmem:[#allocation5] sm:$0xff] %v662
          %679 = vst [vmem:[#allocation5 + $0x8] sm:$0xff] %v663
          %680 = vst [vmem:[#allocation5 + $0x10] sm:$0xff] %v664
          %681 = vst [vmem:[#allocation5 + $0x18] sm:$0xff] %v665
          %682 = vst [vmem:[#allocation5 + $0x20] sm:$0xff] %v666
          %683 = vst [vmem:[#allocation5 + $0x28] sm:$0xff] %v667
          %684 = vst [vmem:[#allocation5 + $0x30] sm:$0xff] %v668
          %685 = vst [vmem:[#allocation5 + $0x38] sm:$0xff] %v669
          %686 = vst [vmem:[#allocation5 + $0x40] sm:$0xff] %v670
          %687 = vst [vmem:[#allocation5 + $0x48] sm:$0xff] %v671
          %688 = vst [vmem:[#allocation5 + $0x50] sm:$0xff] %v672
          %689 = vst [vmem:[#allocation5 + $0x58] sm:$0xff] %v673
          %690 = vst [vmem:[#allocation5 + $0x60] sm:$0xff] %v674
          %691 = vst [vmem:[#allocation5 + $0x68] sm:$0xff] %v675
          %692 = vst [vmem:[#allocation5 + $0x70] sm:$0xff] %v676
          %693 = vst [vmem:[#allocation5 + $0x78] sm:$0xff] %v677
        $region53: #{tpu_custom_call.1} parent=47 // loop_footer
          %s584 = sadd.s32 %s582, 1
        $region54: #{tpu_custom_call.1} parent=47 // loop_footer_branch
          %581 = sbr.rel target = $region50
        $region55: #{tpu_custom_call.1} parent=47 // loop_exit
          _
        %s694 = sadd.s32 %s22, 1
        // While loop
        $region56: #{tpu_custom_call.1} parent=47 // loop_pre_header
          _
        $region57: #{tpu_custom_call.1} parent=47 // loop_header
          %s696 = sphi %s694, %s698
          %p697 = scmp.ge.s32.totalorder %s696, 1
        $region58: #{tpu_custom_call.1} parent=47 // loop_header_branch
          %700 = sbr.rel (%p697) target = $region62
        $region59: #{tpu_custom_call.1} parent=47 // loop_body
          %s701 = smul.u32 %s696, 128
          %s702 = sshra.s32 %s701, 7
          %s703 = sand.u32 %s701, 127
          %s704 = scalar_lea.vmem [#allocation2], %s702
          %v705 = vld [vmem:[%s704] sm:$0x1]
          %v706 = vld [vmem:[#allocation4] sm:$0xff]
          %v707 = vld [vmem:[#allocation4 + $0x8] sm:$0xff]
          %v708 = vld [vmem:[#allocation4 + $0x10] sm:$0xff]
          %v709 = vld [vmem:[#allocation4 + $0x18] sm:$0xff]
          %v710 = vld [vmem:[#allocation4 + $0x20] sm:$0xff]
          %v711 = vld [vmem:[#allocation4 + $0x28] sm:$0xff]
          %v712 = vld [vmem:[#allocation4 + $0x30] sm:$0xff]
          %v713 = vld [vmem:[#allocation4 + $0x38] sm:$0xff]
          %v714 = vld [vmem:[#allocation4 + $0x40] sm:$0xff]
          %v715 = vld [vmem:[#allocation4 + $0x48] sm:$0xff]
          %v716 = vld [vmem:[#allocation4 + $0x50] sm:$0xff]
          %v717 = vld [vmem:[#allocation4 + $0x58] sm:$0xff]
          %v718 = vld [vmem:[#allocation4 + $0x60] sm:$0xff]
          %v719 = vld [vmem:[#allocation4 + $0x68] sm:$0xff]
          %v720 = vld [vmem:[#allocation4 + $0x70] sm:$0xff]
          %v721 = vld [vmem:[#allocation4 + $0x78] sm:$0xff]
          %v723 = vlaneseq
          %v724 = vshrl.u32 %v723, 7
          %v725 = vsub.s32 0, %v724
          %v726 = vrot.slane %v705, %v725
          %vm728 = vcmp.gt.f32.partialorder %v726, %v706
          %vm729 = vcmp.gt.f32.partialorder %v726, %v707
          %vm730 = vcmp.gt.f32.partialorder %v726, %v708
          %vm731 = vcmp.gt.f32.partialorder %v726, %v709
          %vm732 = vcmp.gt.f32.partialorder %v726, %v710
          %vm733 = vcmp.gt.f32.partialorder %v726, %v711
          %vm734 = vcmp.gt.f32.partialorder %v726, %v712
          %vm735 = vcmp.gt.f32.partialorder %v726, %v713
          %vm736 = vcmp.gt.f32.partialorder %v726, %v714
          %vm737 = vcmp.gt.f32.partialorder %v726, %v715
          %vm738 = vcmp.gt.f32.partialorder %v726, %v716
          %vm739 = vcmp.gt.f32.partialorder %v726, %v717
          %vm740 = vcmp.gt.f32.partialorder %v726, %v718
          %vm741 = vcmp.gt.f32.partialorder %v726, %v719
          %vm742 = vcmp.gt.f32.partialorder %v726, %v720
          %vm743 = vcmp.gt.f32.partialorder %v726, %v721
          %v744 = vld [vmem:[#allocation5] sm:$0xff]
          %v745 = vld [vmem:[#allocation5 + $0x8] sm:$0xff]
          %v746 = vld [vmem:[#allocation5 + $0x10] sm:$0xff]
          %v747 = vld [vmem:[#allocation5 + $0x18] sm:$0xff]
          %v748 = vld [vmem:[#allocation5 + $0x20] sm:$0xff]
          %v749 = vld [vmem:[#allocation5 + $0x28] sm:$0xff]
          %v750 = vld [vmem:[#allocation5 + $0x30] sm:$0xff]
          %v751 = vld [vmem:[#allocation5 + $0x38] sm:$0xff]
          %v752 = vld [vmem:[#allocation5 + $0x40] sm:$0xff]
          %v753 = vld [vmem:[#allocation5 + $0x48] sm:$0xff]
          %v754 = vld [vmem:[#allocation5 + $0x50] sm:$0xff]
          %v755 = vld [vmem:[#allocation5 + $0x58] sm:$0xff]
          %v756 = vld [vmem:[#allocation5 + $0x60] sm:$0xff]
          %v757 = vld [vmem:[#allocation5 + $0x68] sm:$0xff]
          %v758 = vld [vmem:[#allocation5 + $0x70] sm:$0xff]
          %v759 = vld [vmem:[#allocation5 + $0x78] sm:$0xff]
          %v760 = vsel %vm728, 1, 0
          %v761 = vsel %vm729, 1, 0
          %v762 = vsel %vm730, 1, 0
          %v763 = vsel %vm731, 1, 0
          %v764 = vsel %vm732, 1, 0
          %v765 = vsel %vm733, 1, 0
          %v766 = vsel %vm734, 1, 0
          %v767 = vsel %vm735, 1, 0
          %v768 = vsel %vm736, 1, 0
          %v769 = vsel %vm737, 1, 0
          %v770 = vsel %vm738, 1, 0
          %v771 = vsel %vm739, 1, 0
          %v772 = vsel %vm740, 1, 0
          %v773 = vsel %vm741, 1, 0
          %v774 = vsel %vm742, 1, 0
          %v775 = vsel %vm743, 1, 0
          %v776 = vadd.s32 %v744, %v760
          %v777 = vadd.s32 %v745, %v761
          %v778 = vadd.s32 %v746, %v762
          %v779 = vadd.s32 %v747, %v763
          %v780 = vadd.s32 %v748, %v764
          %v781 = vadd.s32 %v749, %v765
          %v782 = vadd.s32 %v750, %v766
          %v783 = vadd.s32 %v751, %v767
          %v784 = vadd.s32 %v752, %v768
          %v785 = vadd.s32 %v753, %v769
          %v786 = vadd.s32 %v754, %v770
          %v787 = vadd.s32 %v755, %v771
          %v788 = vadd.s32 %v756, %v772
          %v789 = vadd.s32 %v757, %v773
          %v790 = vadd.s32 %v758, %v774
          %v791 = vadd.s32 %v759, %v775
          %792 = vst [vmem:[#allocation5] sm:$0xff] %v776
          %793 = vst [vmem:[#allocation5 + $0x8] sm:$0xff] %v777
          %794 = vst [vmem:[#allocation5 + $0x10] sm:$0xff] %v778
          %795 = vst [vmem:[#allocation5 + $0x18] sm:$0xff] %v779
          %796 = vst [vmem:[#allocation5 + $0x20] sm:$0xff] %v780
          %797 = vst [vmem:[#allocation5 + $0x28] sm:$0xff] %v781
          %798 = vst [vmem:[#allocation5 + $0x30] sm:$0xff] %v782
          %799 = vst [vmem:[#allocation5 + $0x38] sm:$0xff] %v783
          %800 = vst [vmem:[#allocation5 + $0x40] sm:$0xff] %v784
          %801 = vst [vmem:[#allocation5 + $0x48] sm:$0xff] %v785
          %802 = vst [vmem:[#allocation5 + $0x50] sm:$0xff] %v786
          %803 = vst [vmem:[#allocation5 + $0x58] sm:$0xff] %v787
          %804 = vst [vmem:[#allocation5 + $0x60] sm:$0xff] %v788
          %805 = vst [vmem:[#allocation5 + $0x68] sm:$0xff] %v789
          %806 = vst [vmem:[#allocation5 + $0x70] sm:$0xff] %v790
          %807 = vst [vmem:[#allocation5 + $0x78] sm:$0xff] %v791
        $region60: #{tpu_custom_call.1} parent=47 // loop_footer
          %s698 = sadd.s32 %s696, 1
        $region61: #{tpu_custom_call.1} parent=47 // loop_footer_branch
          %695 = sbr.rel target = $region57
        $region62: #{tpu_custom_call.1} parent=47 // loop_exit
          _
        %v808 = vld [vmem:[#allocation4] sm:$0xff]
        %v809 = vld [vmem:[#allocation4 + $0x8] sm:$0xff]
        %v810 = vld [vmem:[#allocation4 + $0x10] sm:$0xff]
        %v811 = vld [vmem:[#allocation4 + $0x18] sm:$0xff]
        %v812 = vld [vmem:[#allocation4 + $0x20] sm:$0xff]
        %v813 = vld [vmem:[#allocation4 + $0x28] sm:$0xff]
        %v814 = vld [vmem:[#allocation4 + $0x30] sm:$0xff]
        %v815 = vld [vmem:[#allocation4 + $0x38] sm:$0xff]
        %v816 = vld [vmem:[#allocation4 + $0x40] sm:$0xff]
        %v817 = vld [vmem:[#allocation4 + $0x48] sm:$0xff]
        %v818 = vld [vmem:[#allocation4 + $0x50] sm:$0xff]
        %v819 = vld [vmem:[#allocation4 + $0x58] sm:$0xff]
        %v820 = vld [vmem:[#allocation4 + $0x60] sm:$0xff]
        %v821 = vld [vmem:[#allocation4 + $0x68] sm:$0xff]
        %v822 = vld [vmem:[#allocation4 + $0x70] sm:$0xff]
        %v823 = vld [vmem:[#allocation4 + $0x78] sm:$0xff]
        %v824 = vlaneseq
        %v825 = vshrl.u32 %v824, 7
        %v826 = vadd.s32 %v825, 8
        %v827 = vadd.s32 %v825, 16
        %v828 = vadd.s32 %v825, 24
        %v829 = vadd.s32 %v825, 32
        %v830 = vadd.s32 %v825, 40
        %v831 = vadd.s32 %v825, 48
        %v832 = vadd.s32 %v825, 56
        %v833 = vadd.s32 %v825, 64
        %v834 = vadd.s32 %v825, 72
        %v835 = vadd.s32 %v825, 80
        %v836 = vadd.s32 %v825, 88
        %v837 = vadd.s32 %v825, 96
        %v838 = vadd.s32 %v825, 104
        %v839 = vadd.s32 %v825, 112
        %v840 = vadd.s32 %v825, 120
        %v841 = vld [vmem:[%s480] sm:$0x1]
        %v842 = vlaneseq
        %v843 = vand.u32 %v842, 127
        %v845 = vlaneseq
        %v846 = vshrl.u32 %v845, 7
        %v847 = vsub.s32 0, %v846
        %v848 = vrot.slane %v841, %v847
        %vm850 = vcmp.gt.f32.partialorder %v848, %v808
        %vm851 = vcmp.gt.f32.partialorder %v848, %v809
        %vm852 = vcmp.gt.f32.partialorder %v848, %v810
        %vm853 = vcmp.gt.f32.partialorder %v848, %v811
        %vm854 = vcmp.gt.f32.partialorder %v848, %v812
        %vm855 = vcmp.gt.f32.partialorder %v848, %v813
        %vm856 = vcmp.gt.f32.partialorder %v848, %v814
        %vm857 = vcmp.gt.f32.partialorder %v848, %v815
        %vm858 = vcmp.gt.f32.partialorder %v848, %v816
        %vm859 = vcmp.gt.f32.partialorder %v848, %v817
        %vm860 = vcmp.gt.f32.partialorder %v848, %v818
        %vm861 = vcmp.gt.f32.partialorder %v848, %v819
        %vm862 = vcmp.gt.f32.partialorder %v848, %v820
        %vm863 = vcmp.gt.f32.partialorder %v848, %v821
        %vm864 = vcmp.gt.f32.partialorder %v848, %v822
        %vm865 = vcmp.gt.f32.partialorder %v848, %v823
        %vm866 = vcmp.eq.f32.partialorder %v848, %v808
        %vm867 = vcmp.eq.f32.partialorder %v848, %v809
        %vm868 = vcmp.eq.f32.partialorder %v848, %v810
        %vm869 = vcmp.eq.f32.partialorder %v848, %v811
        %vm870 = vcmp.eq.f32.partialorder %v848, %v812
        %vm871 = vcmp.eq.f32.partialorder %v848, %v813
        %vm872 = vcmp.eq.f32.partialorder %v848, %v814
        %vm873 = vcmp.eq.f32.partialorder %v848, %v815
        %vm874 = vcmp.eq.f32.partialorder %v848, %v816
        %vm875 = vcmp.eq.f32.partialorder %v848, %v817
        %vm876 = vcmp.eq.f32.partialorder %v848, %v818
        %vm877 = vcmp.eq.f32.partialorder %v848, %v819
        %vm878 = vcmp.eq.f32.partialorder %v848, %v820
        %vm879 = vcmp.eq.f32.partialorder %v848, %v821
        %vm880 = vcmp.eq.f32.partialorder %v848, %v822
        %vm881 = vcmp.eq.f32.partialorder %v848, %v823
        %vm882 = vcmp.lt.s32.totalorder %v843, %v825
        %vm883 = vcmp.lt.s32.totalorder %v843, %v826
        %vm884 = vcmp.lt.s32.totalorder %v843, %v827
        %vm885 = vcmp.lt.s32.totalorder %v843, %v828
        %vm886 = vcmp.lt.s32.totalorder %v843, %v829
        %vm887 = vcmp.lt.s32.totalorder %v843, %v830
        %vm888 = vcmp.lt.s32.totalorder %v843, %v831
        %vm889 = vcmp.lt.s32.totalorder %v843, %v832
        %vm890 = vcmp.lt.s32.totalorder %v843, %v833
        %vm891 = vcmp.lt.s32.totalorder %v843, %v834
        %vm892 = vcmp.lt.s32.totalorder %v843, %v835
        %vm893 = vcmp.lt.s32.totalorder %v843, %v836
        %vm894 = vcmp.lt.s32.totalorder %v843, %v837
        %vm895 = vcmp.lt.s32.totalorder %v843, %v838
        %vm896 = vcmp.lt.s32.totalorder %v843, %v839
        %vm897 = vcmp.lt.s32.totalorder %v843, %v840
        %vm898 = vmand %vm866, %vm882
        %vm899 = vmand %vm867, %vm883
        %vm900 = vmand %vm868, %vm884
        %vm901 = vmand %vm869, %vm885
        %vm902 = vmand %vm870, %vm886
        %vm903 = vmand %vm871, %vm887
        %vm904 = vmand %vm872, %vm888
        %vm905 = vmand %vm873, %vm889
        %vm906 = vmand %vm874, %vm890
        %vm907 = vmand %vm875, %vm891
        %vm908 = vmand %vm876, %vm892
        %vm909 = vmand %vm877, %vm893
        %vm910 = vmand %vm878, %vm894
        %vm911 = vmand %vm879, %vm895
        %vm912 = vmand %vm880, %vm896
        %vm913 = vmand %vm881, %vm897
        %vm914 = vmor %vm850, %vm898
        %vm915 = vmor %vm851, %vm899
        %vm916 = vmor %vm852, %vm900
        %vm917 = vmor %vm853, %vm901
        %vm918 = vmor %vm854, %vm902
        %vm919 = vmor %vm855, %vm903
        %vm920 = vmor %vm856, %vm904
        %vm921 = vmor %vm857, %vm905
        %vm922 = vmor %vm858, %vm906
        %vm923 = vmor %vm859, %vm907
        %vm924 = vmor %vm860, %vm908
        %vm925 = vmor %vm861, %vm909
        %vm926 = vmor %vm862, %vm910
        %vm927 = vmor %vm863, %vm911
        %vm928 = vmor %vm864, %vm912
        %vm929 = vmor %vm865, %vm913
        %v930 = vld [vmem:[#allocation5] sm:$0xff]
        %v931 = vld [vmem:[#allocation5 + $0x8] sm:$0xff]
        %v932 = vld [vmem:[#allocation5 + $0x10] sm:$0xff]
        %v933 = vld [vmem:[#allocation5 + $0x18] sm:$0xff]
        %v934 = vld [vmem:[#allocation5 + $0x20] sm:$0xff]
        %v935 = vld [vmem:[#allocation5 + $0x28] sm:$0xff]
        %v936 = vld [vmem:[#allocation5 + $0x30] sm:$0xff]
        %v937 = vld [vmem:[#allocation5 + $0x38] sm:$0xff]
        %v938 = vld [vmem:[#allocation5 + $0x40] sm:$0xff]
        %v939 = vld [vmem:[#allocation5 + $0x48] sm:$0xff]
        %v940 = vld [vmem:[#allocation5 + $0x50] sm:$0xff]
        %v941 = vld [vmem:[#allocation5 + $0x58] sm:$0xff]
        %v942 = vld [vmem:[#allocation5 + $0x60] sm:$0xff]
        %v943 = vld [vmem:[#allocation5 + $0x68] sm:$0xff]
        %v944 = vld [vmem:[#allocation5 + $0x70] sm:$0xff]
        %v945 = vld [vmem:[#allocation5 + $0x78] sm:$0xff]
        %v946 = vsel %vm914, 1, 0
        %v947 = vsel %vm915, 1, 0
        %v948 = vsel %vm916, 1, 0
        %v949 = vsel %vm917, 1, 0
        %v950 = vsel %vm918, 1, 0
        %v951 = vsel %vm919, 1, 0
        %v952 = vsel %vm920, 1, 0
        %v953 = vsel %vm921, 1, 0
        %v954 = vsel %vm922, 1, 0
        %v955 = vsel %vm923, 1, 0
        %v956 = vsel %vm924, 1, 0
        %v957 = vsel %vm925, 1, 0
        %v958 = vsel %vm926, 1, 0
        %v959 = vsel %vm927, 1, 0
        %v960 = vsel %vm928, 1, 0
        %v961 = vsel %vm929, 1, 0
        %v962 = vadd.s32 %v930, %v946
        %v963 = vadd.s32 %v931, %v947
        %v964 = vadd.s32 %v932, %v948
        %v965 = vadd.s32 %v933, %v949
        %v966 = vadd.s32 %v934, %v950
        %v967 = vadd.s32 %v935, %v951
        %v968 = vadd.s32 %v936, %v952
        %v969 = vadd.s32 %v937, %v953
        %v970 = vadd.s32 %v938, %v954
        %v971 = vadd.s32 %v939, %v955
        %v972 = vadd.s32 %v940, %v956
        %v973 = vadd.s32 %v941, %v957
        %v974 = vadd.s32 %v942, %v958
        %v975 = vadd.s32 %v943, %v959
        %v976 = vadd.s32 %v944, %v960
        %v977 = vadd.s32 %v945, %v961
        %978 = vst [vmem:[#allocation5] sm:$0xff] %v962
        %979 = vst [vmem:[#allocation5 + $0x8] sm:$0xff] %v963
        %980 = vst [vmem:[#allocation5 + $0x10] sm:$0xff] %v964
        %981 = vst [vmem:[#allocation5 + $0x18] sm:$0xff] %v965
        %982 = vst [vmem:[#allocation5 + $0x20] sm:$0xff] %v966
        %983 = vst [vmem:[#allocation5 + $0x28] sm:$0xff] %v967
        %984 = vst [vmem:[#allocation5 + $0x30] sm:$0xff] %v968
        %985 = vst [vmem:[#allocation5 + $0x38] sm:$0xff] %v969
        %986 = vst [vmem:[#allocation5 + $0x40] sm:$0xff] %v970
        %987 = vst [vmem:[#allocation5 + $0x48] sm:$0xff] %v971
        %988 = vst [vmem:[#allocation5 + $0x50] sm:$0xff] %v972
        %989 = vst [vmem:[#allocation5 + $0x58] sm:$0xff] %v973
        %990 = vst [vmem:[#allocation5 + $0x60] sm:$0xff] %v974
        %991 = vst [vmem:[#allocation5 + $0x68] sm:$0xff] %v975
        %992 = vst [vmem:[#allocation5 + $0x70] sm:$0xff] %v976
        %993 = vst [vmem:[#allocation5 + $0x78] sm:$0xff] %v977
        %v994 = vld [vmem:[#allocation5] sm:$0xff]
        %v995 = vld [vmem:[#allocation5 + $0x8] sm:$0xff]
        %v996 = vld [vmem:[#allocation5 + $0x10] sm:$0xff]
        %v997 = vld [vmem:[#allocation5 + $0x18] sm:$0xff]
        %v998 = vld [vmem:[#allocation5 + $0x20] sm:$0xff]
        %v999 = vld [vmem:[#allocation5 + $0x28] sm:$0xff]
        %v1000 = vld [vmem:[#allocation5 + $0x30] sm:$0xff]
        %v1001 = vld [vmem:[#allocation5 + $0x38] sm:$0xff]
        %v1002 = vld [vmem:[#allocation5 + $0x40] sm:$0xff]
        %v1003 = vld [vmem:[#allocation5 + $0x48] sm:$0xff]
        %v1004 = vld [vmem:[#allocation5 + $0x50] sm:$0xff]
        %v1005 = vld [vmem:[#allocation5 + $0x58] sm:$0xff]
        %v1006 = vld [vmem:[#allocation5 + $0x60] sm:$0xff]
        %v1007 = vld [vmem:[#allocation5 + $0x68] sm:$0xff]
        %v1008 = vld [vmem:[#allocation5 + $0x70] sm:$0xff]
        %v1009 = vld [vmem:[#allocation5 + $0x78] sm:$0xff]
        %v1010 = vand.u32 %v994, 65535
        %v1011 = vshrl.u32 %v994, 16
        %v1012 = vcvt.s32.f32 %v1010
        %v1013 = vcvt.s32.f32 %v1011
        %1014 = vadd.xlane.f32.xlu0 %v1012
        %v1015 = vpop.xlane.xlu0 %1014
        %1016 = vadd.xlane.f32.xlu0 %v1013
        %v1017 = vpop.xlane.xlu0 %1016
        %v1018 = vcvt.f32.s32 %v1015
        %v1019 = vcvt.f32.s32 %v1017
        %v1020 = vshll.u32 %v1019, 16
        %v1021 = vadd.s32 %v1020, %v1018
        %v1022 = vand.u32 %v995, 65535
        %v1023 = vshrl.u32 %v995, 16
        %v1024 = vcvt.s32.f32 %v1022
        %v1025 = vcvt.s32.f32 %v1023
        %1026 = vadd.xlane.f32.xlu0 %v1024
        %v1027 = vpop.xlane.xlu0 %1026
        %1028 = vadd.xlane.f32.xlu0 %v1025
        %v1029 = vpop.xlane.xlu0 %1028
        %v1030 = vcvt.f32.s32 %v1027
        %v1031 = vcvt.f32.s32 %v1029
        %v1032 = vshll.u32 %v1031, 16
        %v1033 = vadd.s32 %v1032, %v1030
        %v1034 = vand.u32 %v996, 65535
        %v1035 = vshrl.u32 %v996, 16
        %v1036 = vcvt.s32.f32 %v1034
        %v1037 = vcvt.s32.f32 %v1035
        %1038 = vadd.xlane.f32.xlu0 %v1036
        %v1039 = vpop.xlane.xlu0 %1038
        %1040 = vadd.xlane.f32.xlu0 %v1037
        %v1041 = vpop.xlane.xlu0 %1040
        %v1042 = vcvt.f32.s32 %v1039
        %v1043 = vcvt.f32.s32 %v1041
        %v1044 = vshll.u32 %v1043, 16
        %v1045 = vadd.s32 %v1044, %v1042
        %v1046 = vand.u32 %v997, 65535
        %v1047 = vshrl.u32 %v997, 16
        %v1048 = vcvt.s32.f32 %v1046
        %v1049 = vcvt.s32.f32 %v1047
        %1050 = vadd.xlane.f32.xlu0 %v1048
        %v1051 = vpop.xlane.xlu0 %1050
        %1052 = vadd.xlane.f32.xlu0 %v1049
        %v1053 = vpop.xlane.xlu0 %1052
        %v1054 = vcvt.f32.s32 %v1051
        %v1055 = vcvt.f32.s32 %v1053
        %v1056 = vshll.u32 %v1055, 16
        %v1057 = vadd.s32 %v1056, %v1054
        %v1058 = vand.u32 %v998, 65535
        %v1059 = vshrl.u32 %v998, 16
        %v1060 = vcvt.s32.f32 %v1058
        %v1061 = vcvt.s32.f32 %v1059
        %1062 = vadd.xlane.f32.xlu0 %v1060
        %v1063 = vpop.xlane.xlu0 %1062
        %1064 = vadd.xlane.f32.xlu0 %v1061
        %v1065 = vpop.xlane.xlu0 %1064
        %v1066 = vcvt.f32.s32 %v1063
        %v1067 = vcvt.f32.s32 %v1065
        %v1068 = vshll.u32 %v1067, 16
        %v1069 = vadd.s32 %v1068, %v1066
        %v1070 = vand.u32 %v999, 65535
        %v1071 = vshrl.u32 %v999, 16
        %v1072 = vcvt.s32.f32 %v1070
        %v1073 = vcvt.s32.f32 %v1071
        %1074 = vadd.xlane.f32.xlu0 %v1072
        %v1075 = vpop.xlane.xlu0 %1074
        %1076 = vadd.xlane.f32.xlu0 %v1073
        %v1077 = vpop.xlane.xlu0 %1076
        %v1078 = vcvt.f32.s32 %v1075
        %v1079 = vcvt.f32.s32 %v1077
        %v1080 = vshll.u32 %v1079, 16
        %v1081 = vadd.s32 %v1080, %v1078
        %v1082 = vand.u32 %v1000, 65535
        %v1083 = vshrl.u32 %v1000, 16
        %v1084 = vcvt.s32.f32 %v1082
        %v1085 = vcvt.s32.f32 %v1083
        %1086 = vadd.xlane.f32.xlu0 %v1084
        %v1087 = vpop.xlane.xlu0 %1086
        %1088 = vadd.xlane.f32.xlu0 %v1085
        %v1089 = vpop.xlane.xlu0 %1088
        %v1090 = vcvt.f32.s32 %v1087
        %v1091 = vcvt.f32.s32 %v1089
        %v1092 = vshll.u32 %v1091, 16
        %v1093 = vadd.s32 %v1092, %v1090
        %v1094 = vand.u32 %v1001, 65535
        %v1095 = vshrl.u32 %v1001, 16
        %v1096 = vcvt.s32.f32 %v1094
        %v1097 = vcvt.s32.f32 %v1095
        %1098 = vadd.xlane.f32.xlu0 %v1096
        %v1099 = vpop.xlane.xlu0 %1098
        %1100 = vadd.xlane.f32.xlu0 %v1097
        %v1101 = vpop.xlane.xlu0 %1100
        %v1102 = vcvt.f32.s32 %v1099
        %v1103 = vcvt.f32.s32 %v1101
        %v1104 = vshll.u32 %v1103, 16
        %v1105 = vadd.s32 %v1104, %v1102
        %v1106 = vand.u32 %v1002, 65535
        %v1107 = vshrl.u32 %v1002, 16
        %v1108 = vcvt.s32.f32 %v1106
        %v1109 = vcvt.s32.f32 %v1107
        %1110 = vadd.xlane.f32.xlu0 %v1108
        %v1111 = vpop.xlane.xlu0 %1110
        %1112 = vadd.xlane.f32.xlu0 %v1109
        %v1113 = vpop.xlane.xlu0 %1112
        %v1114 = vcvt.f32.s32 %v1111
        %v1115 = vcvt.f32.s32 %v1113
        %v1116 = vshll.u32 %v1115, 16
        %v1117 = vadd.s32 %v1116, %v1114
        %v1118 = vand.u32 %v1003, 65535
        %v1119 = vshrl.u32 %v1003, 16
        %v1120 = vcvt.s32.f32 %v1118
        %v1121 = vcvt.s32.f32 %v1119
        %1122 = vadd.xlane.f32.xlu0 %v1120
        %v1123 = vpop.xlane.xlu0 %1122
        %1124 = vadd.xlane.f32.xlu0 %v1121
        %v1125 = vpop.xlane.xlu0 %1124
        %v1126 = vcvt.f32.s32 %v1123
        %v1127 = vcvt.f32.s32 %v1125
        %v1128 = vshll.u32 %v1127, 16
        %v1129 = vadd.s32 %v1128, %v1126
        %v1130 = vand.u32 %v1004, 65535
        %v1131 = vshrl.u32 %v1004, 16
        %v1132 = vcvt.s32.f32 %v1130
        %v1133 = vcvt.s32.f32 %v1131
        %1134 = vadd.xlane.f32.xlu0 %v1132
        %v1135 = vpop.xlane.xlu0 %1134
        %1136 = vadd.xlane.f32.xlu0 %v1133
        %v1137 = vpop.xlane.xlu0 %1136
        %v1138 = vcvt.f32.s32 %v1135
        %v1139 = vcvt.f32.s32 %v1137
        %v1140 = vshll.u32 %v1139, 16
        %v1141 = vadd.s32 %v1140, %v1138
        %v1142 = vand.u32 %v1005, 65535
        %v1143 = vshrl.u32 %v1005, 16
        %v1144 = vcvt.s32.f32 %v1142
        %v1145 = vcvt.s32.f32 %v1143
        %1146 = vadd.xlane.f32.xlu0 %v1144
        %v1147 = vpop.xlane.xlu0 %1146
        %1148 = vadd.xlane.f32.xlu0 %v1145
        %v1149 = vpop.xlane.xlu0 %1148
        %v1150 = vcvt.f32.s32 %v1147
        %v1151 = vcvt.f32.s32 %v1149
        %v1152 = vshll.u32 %v1151, 16
        %v1153 = vadd.s32 %v1152, %v1150
        %v1154 = vand.u32 %v1006, 65535
        %v1155 = vshrl.u32 %v1006, 16
        %v1156 = vcvt.s32.f32 %v1154
        %v1157 = vcvt.s32.f32 %v1155
        %1158 = vadd.xlane.f32.xlu0 %v1156
        %v1159 = vpop.xlane.xlu0 %1158
        %1160 = vadd.xlane.f32.xlu0 %v1157
        %v1161 = vpop.xlane.xlu0 %1160
        %v1162 = vcvt.f32.s32 %v1159
        %v1163 = vcvt.f32.s32 %v1161
        %v1164 = vshll.u32 %v1163, 16
        %v1165 = vadd.s32 %v1164, %v1162
        %v1166 = vand.u32 %v1007, 65535
        %v1167 = vshrl.u32 %v1007, 16
        %v1168 = vcvt.s32.f32 %v1166
        %v1169 = vcvt.s32.f32 %v1167
        %1170 = vadd.xlane.f32.xlu0 %v1168
        %v1171 = vpop.xlane.xlu0 %1170
        %1172 = vadd.xlane.f32.xlu0 %v1169
        %v1173 = vpop.xlane.xlu0 %1172
        %v1174 = vcvt.f32.s32 %v1171
        %v1175 = vcvt.f32.s32 %v1173
        %v1176 = vshll.u32 %v1175, 16
        %v1177 = vadd.s32 %v1176, %v1174
        %v1178 = vand.u32 %v1008, 65535
        %v1179 = vshrl.u32 %v1008, 16
        %v1180 = vcvt.s32.f32 %v1178
        %v1181 = vcvt.s32.f32 %v1179
        %1182 = vadd.xlane.f32.xlu0 %v1180
        %v1183 = vpop.xlane.xlu0 %1182
        %1184 = vadd.xlane.f32.xlu0 %v1181
        %v1185 = vpop.xlane.xlu0 %1184
        %v1186 = vcvt.f32.s32 %v1183
        %v1187 = vcvt.f32.s32 %v1185
        %v1188 = vshll.u32 %v1187, 16
        %v1189 = vadd.s32 %v1188, %v1186
        %v1190 = vand.u32 %v1009, 65535
        %v1191 = vshrl.u32 %v1009, 16
        %v1192 = vcvt.s32.f32 %v1190
        %v1193 = vcvt.s32.f32 %v1191
        %1194 = vadd.xlane.f32.xlu0 %v1192
        %v1195 = vpop.xlane.xlu0 %1194
        %1196 = vadd.xlane.f32.xlu0 %v1193
        %v1197 = vpop.xlane.xlu0 %1196
        %v1198 = vcvt.f32.s32 %v1195
        %v1199 = vcvt.f32.s32 %v1197
        %v1200 = vshll.u32 %v1199, 16
        %v1201 = vadd.s32 %v1200, %v1198
        %v1202 = vld [vmem:[#allocation6] sm:$0x1]
        %v1203 = vmul.u32 %v1202, 3
        %v1204 = vstv %s477
        %v1205 = vadd.s32 %v843, %v1204
        %vm1206 = vcmp.lt.s32.totalorder %v1205, 16
        %1207 = vset.pattern.permute.xlu0 0
        %1208 = vperm.xlu0 %1207, %v1203
        %v1209 = vpop.permute.xlu0 %1208
        %v1210 = vlaneseq
        %v1211 = vshrl.u32 %v1210, 7
        %v1212 = vsub.s32 0, %v1211
        %v1213 = vrot.slane %v1209, %v1212
        %vm1214 = vcmp.lt.s32.totalorder %v1021, %v1213
        %vm1215 = vcmp.lt.s32.totalorder %v1033, %v1213
        %vm1216 = vcmp.lt.s32.totalorder %v1045, %v1213
        %vm1217 = vcmp.lt.s32.totalorder %v1057, %v1213
        %vm1218 = vcmp.lt.s32.totalorder %v1069, %v1213
        %vm1219 = vcmp.lt.s32.totalorder %v1081, %v1213
        %vm1220 = vcmp.lt.s32.totalorder %v1093, %v1213
        %vm1221 = vcmp.lt.s32.totalorder %v1105, %v1213
        %vm1222 = vcmp.lt.s32.totalorder %v1117, %v1213
        %vm1223 = vcmp.lt.s32.totalorder %v1129, %v1213
        %vm1224 = vcmp.lt.s32.totalorder %v1141, %v1213
        %vm1225 = vcmp.lt.s32.totalorder %v1153, %v1213
        %vm1226 = vcmp.lt.s32.totalorder %v1165, %v1213
        %vm1227 = vcmp.lt.s32.totalorder %v1177, %v1213
        %vm1228 = vcmp.lt.s32.totalorder %v1189, %v1213
        %vm1229 = vcmp.lt.s32.totalorder %v1201, %v1213
        %v1230 = vsel %vm1214, 1, 0
        %v1231 = vsel %vm1215, 1, 0
        %v1232 = vsel %vm1216, 1, 0
        %v1233 = vsel %vm1217, 1, 0
        %v1234 = vsel %vm1218, 1, 0
        %v1235 = vsel %vm1219, 1, 0
        %v1236 = vsel %vm1220, 1, 0
        %v1237 = vsel %vm1221, 1, 0
        %v1238 = vsel %vm1222, 1, 0
        %v1239 = vsel %vm1223, 1, 0
        %v1240 = vsel %vm1224, 1, 0
        %v1241 = vsel %vm1225, 1, 0
        %v1242 = vsel %vm1226, 1, 0
        %v1243 = vsel %vm1227, 1, 0
        %v1244 = vsel %vm1228, 1, 0
        %v1245 = vsel %vm1229, 1, 0
        %v1246 = vlaneseq
        %v1247 = vshrl.u32 %v1246, 7
        %v1248 = vsub.s32 0, %v1247
        %v1249 = vrot.slane %v1230, %v1248
        %v1250 = vlaneseq
        %v1251 = vshrl.u32 %v1250, 7
        %v1252 = vsub.s32 1, %v1251
        %v1253 = vrot.slane %v1230, %v1252
        %v1254 = vlaneseq
        %v1255 = vshrl.u32 %v1254, 7
        %v1256 = vsub.s32 2, %v1255
        %v1257 = vrot.slane %v1230, %v1256
        %v1258 = vlaneseq
        %v1259 = vshrl.u32 %v1258, 7
        %v1260 = vsub.s32 3, %v1259
        %v1261 = vrot.slane %v1230, %v1260
        %v1262 = vlaneseq
        %v1263 = vshrl.u32 %v1262, 7
        %v1264 = vsub.s32 4, %v1263
        %v1265 = vrot.slane %v1230, %v1264
        %v1266 = vlaneseq
        %v1267 = vshrl.u32 %v1266, 7
        %v1268 = vsub.s32 5, %v1267
        %v1269 = vrot.slane %v1230, %v1268
        %v1270 = vlaneseq
        %v1271 = vshrl.u32 %v1270, 7
        %v1272 = vsub.s32 6, %v1271
        %v1273 = vrot.slane %v1230, %v1272
        %v1274 = vlaneseq
        %v1275 = vshrl.u32 %v1274, 7
        %v1276 = vsub.s32 7, %v1275
        %v1277 = vrot.slane %v1230, %v1276
        %v1278 = vlaneseq
        %v1279 = vshrl.u32 %v1278, 7
        %v1280 = vsub.s32 0, %v1279
        %v1281 = vrot.slane %v1231, %v1280
        %v1282 = vlaneseq
        %v1283 = vshrl.u32 %v1282, 7
        %v1284 = vsub.s32 1, %v1283
        %v1285 = vrot.slane %v1231, %v1284
        %v1286 = vlaneseq
        %v1287 = vshrl.u32 %v1286, 7
        %v1288 = vsub.s32 2, %v1287
        %v1289 = vrot.slane %v1231, %v1288
        %v1290 = vlaneseq
        %v1291 = vshrl.u32 %v1290, 7
        %v1292 = vsub.s32 3, %v1291
        %v1293 = vrot.slane %v1231, %v1292
        %v1294 = vlaneseq
        %v1295 = vshrl.u32 %v1294, 7
        %v1296 = vsub.s32 4, %v1295
        %v1297 = vrot.slane %v1231, %v1296
        %v1298 = vlaneseq
        %v1299 = vshrl.u32 %v1298, 7
        %v1300 = vsub.s32 5, %v1299
        %v1301 = vrot.slane %v1231, %v1300
        %v1302 = vlaneseq
        %v1303 = vshrl.u32 %v1302, 7
        %v1304 = vsub.s32 6, %v1303
        %v1305 = vrot.slane %v1231, %v1304
        %v1306 = vlaneseq
        %v1307 = vshrl.u32 %v1306, 7
        %v1308 = vsub.s32 7, %v1307
        %v1309 = vrot.slane %v1231, %v1308
        %v1310 = vlaneseq
        %v1311 = vshrl.u32 %v1310, 7
        %v1312 = vsub.s32 0, %v1311
        %v1313 = vrot.slane %v1232, %v1312
        %v1314 = vlaneseq
        %v1315 = vshrl.u32 %v1314, 7
        %v1316 = vsub.s32 1, %v1315
        %v1317 = vrot.slane %v1232, %v1316
        %v1318 = vlaneseq
        %v1319 = vshrl.u32 %v1318, 7
        %v1320 = vsub.s32 2, %v1319
        %v1321 = vrot.slane %v1232, %v1320
        %v1322 = vlaneseq
        %v1323 = vshrl.u32 %v1322, 7
        %v1324 = vsub.s32 3, %v1323
        %v1325 = vrot.slane %v1232, %v1324
        %v1326 = vlaneseq
        %v1327 = vshrl.u32 %v1326, 7
        %v1328 = vsub.s32 4, %v1327
        %v1329 = vrot.slane %v1232, %v1328
        %v1330 = vlaneseq
        %v1331 = vshrl.u32 %v1330, 7
        %v1332 = vsub.s32 5, %v1331
        %v1333 = vrot.slane %v1232, %v1332
        %v1334 = vlaneseq
        %v1335 = vshrl.u32 %v1334, 7
        %v1336 = vsub.s32 6, %v1335
        %v1337 = vrot.slane %v1232, %v1336
        %v1338 = vlaneseq
        %v1339 = vshrl.u32 %v1338, 7
        %v1340 = vsub.s32 7, %v1339
        %v1341 = vrot.slane %v1232, %v1340
        %v1342 = vlaneseq
        %v1343 = vshrl.u32 %v1342, 7
        %v1344 = vsub.s32 0, %v1343
        %v1345 = vrot.slane %v1233, %v1344
        %v1346 = vlaneseq
        %v1347 = vshrl.u32 %v1346, 7
        %v1348 = vsub.s32 1, %v1347
        %v1349 = vrot.slane %v1233, %v1348
        %v1350 = vlaneseq
        %v1351 = vshrl.u32 %v1350, 7
        %v1352 = vsub.s32 2, %v1351
        %v1353 = vrot.slane %v1233, %v1352
        %v1354 = vlaneseq
        %v1355 = vshrl.u32 %v1354, 7
        %v1356 = vsub.s32 3, %v1355
        %v1357 = vrot.slane %v1233, %v1356
        %v1358 = vlaneseq
        %v1359 = vshrl.u32 %v1358, 7
        %v1360 = vsub.s32 4, %v1359
        %v1361 = vrot.slane %v1233, %v1360
        %v1362 = vlaneseq
        %v1363 = vshrl.u32 %v1362, 7
        %v1364 = vsub.s32 5, %v1363
        %v1365 = vrot.slane %v1233, %v1364
        %v1366 = vlaneseq
        %v1367 = vshrl.u32 %v1366, 7
        %v1368 = vsub.s32 6, %v1367
        %v1369 = vrot.slane %v1233, %v1368
        %v1370 = vlaneseq
        %v1371 = vshrl.u32 %v1370, 7
        %v1372 = vsub.s32 7, %v1371
        %v1373 = vrot.slane %v1233, %v1372
        %v1374 = vlaneseq
        %v1375 = vshrl.u32 %v1374, 7
        %v1376 = vsub.s32 0, %v1375
        %v1377 = vrot.slane %v1234, %v1376
        %v1378 = vlaneseq
        %v1379 = vshrl.u32 %v1378, 7
        %v1380 = vsub.s32 1, %v1379
        %v1381 = vrot.slane %v1234, %v1380
        %v1382 = vlaneseq
        %v1383 = vshrl.u32 %v1382, 7
        %v1384 = vsub.s32 2, %v1383
        %v1385 = vrot.slane %v1234, %v1384
        %v1386 = vlaneseq
        %v1387 = vshrl.u32 %v1386, 7
        %v1388 = vsub.s32 3, %v1387
        %v1389 = vrot.slane %v1234, %v1388
        %v1390 = vlaneseq
        %v1391 = vshrl.u32 %v1390, 7
        %v1392 = vsub.s32 4, %v1391
        %v1393 = vrot.slane %v1234, %v1392
        %v1394 = vlaneseq
        %v1395 = vshrl.u32 %v1394, 7
        %v1396 = vsub.s32 5, %v1395
        %v1397 = vrot.slane %v1234, %v1396
        %v1398 = vlaneseq
        %v1399 = vshrl.u32 %v1398, 7
        %v1400 = vsub.s32 6, %v1399
        %v1401 = vrot.slane %v1234, %v1400
        %v1402 = vlaneseq
        %v1403 = vshrl.u32 %v1402, 7
        %v1404 = vsub.s32 7, %v1403
        %v1405 = vrot.slane %v1234, %v1404
        %v1406 = vlaneseq
        %v1407 = vshrl.u32 %v1406, 7
        %v1408 = vsub.s32 0, %v1407
        %v1409 = vrot.slane %v1235, %v1408
        %v1410 = vlaneseq
        %v1411 = vshrl.u32 %v1410, 7
        %v1412 = vsub.s32 1, %v1411
        %v1413 = vrot.slane %v1235, %v1412
        %v1414 = vlaneseq
        %v1415 = vshrl.u32 %v1414, 7
        %v1416 = vsub.s32 2, %v1415
        %v1417 = vrot.slane %v1235, %v1416
        %v1418 = vlaneseq
        %v1419 = vshrl.u32 %v1418, 7
        %v1420 = vsub.s32 3, %v1419
        %v1421 = vrot.slane %v1235, %v1420
        %v1422 = vlaneseq
        %v1423 = vshrl.u32 %v1422, 7
        %v1424 = vsub.s32 4, %v1423
        %v1425 = vrot.slane %v1235, %v1424
        %v1426 = vlaneseq
        %v1427 = vshrl.u32 %v1426, 7
        %v1428 = vsub.s32 5, %v1427
        %v1429 = vrot.slane %v1235, %v1428
        %v1430 = vlaneseq
        %v1431 = vshrl.u32 %v1430, 7
        %v1432 = vsub.s32 6, %v1431
        %v1433 = vrot.slane %v1235, %v1432
        %v1434 = vlaneseq
        %v1435 = vshrl.u32 %v1434, 7
        %v1436 = vsub.s32 7, %v1435
        %v1437 = vrot.slane %v1235, %v1436
        %v1438 = vlaneseq
        %v1439 = vshrl.u32 %v1438, 7
        %v1440 = vsub.s32 0, %v1439
        %v1441 = vrot.slane %v1236, %v1440
        %v1442 = vlaneseq
        %v1443 = vshrl.u32 %v1442, 7
        %v1444 = vsub.s32 1, %v1443
        %v1445 = vrot.slane %v1236, %v1444
        %v1446 = vlaneseq
        %v1447 = vshrl.u32 %v1446, 7
        %v1448 = vsub.s32 2, %v1447
        %v1449 = vrot.slane %v1236, %v1448
        %v1450 = vlaneseq
        %v1451 = vshrl.u32 %v1450, 7
        %v1452 = vsub.s32 3, %v1451
        %v1453 = vrot.slane %v1236, %v1452
        %v1454 = vlaneseq
        %v1455 = vshrl.u32 %v1454, 7
        %v1456 = vsub.s32 4, %v1455
        %v1457 = vrot.slane %v1236, %v1456
        %v1458 = vlaneseq
        %v1459 = vshrl.u32 %v1458, 7
        %v1460 = vsub.s32 5, %v1459
        %v1461 = vrot.slane %v1236, %v1460
        %v1462 = vlaneseq
        %v1463 = vshrl.u32 %v1462, 7
        %v1464 = vsub.s32 6, %v1463
        %v1465 = vrot.slane %v1236, %v1464
        %v1466 = vlaneseq
        %v1467 = vshrl.u32 %v1466, 7
        %v1468 = vsub.s32 7, %v1467
        %v1469 = vrot.slane %v1236, %v1468
        %v1470 = vlaneseq
        %v1471 = vshrl.u32 %v1470, 7
        %v1472 = vsub.s32 0, %v1471
        %v1473 = vrot.slane %v1237, %v1472
        %v1474 = vlaneseq
        %v1475 = vshrl.u32 %v1474, 7
        %v1476 = vsub.s32 1, %v1475
        %v1477 = vrot.slane %v1237, %v1476
        %v1478 = vlaneseq
        %v1479 = vshrl.u32 %v1478, 7
        %v1480 = vsub.s32 2, %v1479
        %v1481 = vrot.slane %v1237, %v1480
        %v1482 = vlaneseq
        %v1483 = vshrl.u32 %v1482, 7
        %v1484 = vsub.s32 3, %v1483
        %v1485 = vrot.slane %v1237, %v1484
        %v1486 = vlaneseq
        %v1487 = vshrl.u32 %v1486, 7
        %v1488 = vsub.s32 4, %v1487
        %v1489 = vrot.slane %v1237, %v1488
        %v1490 = vlaneseq
        %v1491 = vshrl.u32 %v1490, 7
        %v1492 = vsub.s32 5, %v1491
        %v1493 = vrot.slane %v1237, %v1492
        %v1494 = vlaneseq
        %v1495 = vshrl.u32 %v1494, 7
        %v1496 = vsub.s32 6, %v1495
        %v1497 = vrot.slane %v1237, %v1496
        %v1498 = vlaneseq
        %v1499 = vshrl.u32 %v1498, 7
        %v1500 = vsub.s32 7, %v1499
        %v1501 = vrot.slane %v1237, %v1500
        %v1502 = vlaneseq
        %v1503 = vshrl.u32 %v1502, 7
        %v1504 = vsub.s32 0, %v1503
        %v1505 = vrot.slane %v1238, %v1504
        %v1506 = vlaneseq
        %v1507 = vshrl.u32 %v1506, 7
        %v1508 = vsub.s32 1, %v1507
        %v1509 = vrot.slane %v1238, %v1508
        %v1510 = vlaneseq
        %v1511 = vshrl.u32 %v1510, 7
        %v1512 = vsub.s32 2, %v1511
        %v1513 = vrot.slane %v1238, %v1512
        %v1514 = vlaneseq
        %v1515 = vshrl.u32 %v1514, 7
        %v1516 = vsub.s32 3, %v1515
        %v1517 = vrot.slane %v1238, %v1516
        %v1518 = vlaneseq
        %v1519 = vshrl.u32 %v1518, 7
        %v1520 = vsub.s32 4, %v1519
        %v1521 = vrot.slane %v1238, %v1520
        %v1522 = vlaneseq
        %v1523 = vshrl.u32 %v1522, 7
        %v1524 = vsub.s32 5, %v1523
        %v1525 = vrot.slane %v1238, %v1524
        %v1526 = vlaneseq
        %v1527 = vshrl.u32 %v1526, 7
        %v1528 = vsub.s32 6, %v1527
        %v1529 = vrot.slane %v1238, %v1528
        %v1530 = vlaneseq
        %v1531 = vshrl.u32 %v1530, 7
        %v1532 = vsub.s32 7, %v1531
        %v1533 = vrot.slane %v1238, %v1532
        %v1534 = vlaneseq
        %v1535 = vshrl.u32 %v1534, 7
        %v1536 = vsub.s32 0, %v1535
        %v1537 = vrot.slane %v1239, %v1536
        %v1538 = vlaneseq
        %v1539 = vshrl.u32 %v1538, 7
        %v1540 = vsub.s32 1, %v1539
        %v1541 = vrot.slane %v1239, %v1540
        %v1542 = vlaneseq
        %v1543 = vshrl.u32 %v1542, 7
        %v1544 = vsub.s32 2, %v1543
        %v1545 = vrot.slane %v1239, %v1544
        %v1546 = vlaneseq
        %v1547 = vshrl.u32 %v1546, 7
        %v1548 = vsub.s32 3, %v1547
        %v1549 = vrot.slane %v1239, %v1548
        %v1550 = vlaneseq
        %v1551 = vshrl.u32 %v1550, 7
        %v1552 = vsub.s32 4, %v1551
        %v1553 = vrot.slane %v1239, %v1552
        %v1554 = vlaneseq
        %v1555 = vshrl.u32 %v1554, 7
        %v1556 = vsub.s32 5, %v1555
        %v1557 = vrot.slane %v1239, %v1556
        %v1558 = vlaneseq
        %v1559 = vshrl.u32 %v1558, 7
        %v1560 = vsub.s32 6, %v1559
        %v1561 = vrot.slane %v1239, %v1560
        %v1562 = vlaneseq
        %v1563 = vshrl.u32 %v1562, 7
        %v1564 = vsub.s32 7, %v1563
        %v1565 = vrot.slane %v1239, %v1564
        %v1566 = vlaneseq
        %v1567 = vshrl.u32 %v1566, 7
        %v1568 = vsub.s32 0, %v1567
        %v1569 = vrot.slane %v1240, %v1568
        %v1570 = vlaneseq
        %v1571 = vshrl.u32 %v1570, 7
        %v1572 = vsub.s32 1, %v1571
        %v1573 = vrot.slane %v1240, %v1572
        %v1574 = vlaneseq
        %v1575 = vshrl.u32 %v1574, 7
        %v1576 = vsub.s32 2, %v1575
        %v1577 = vrot.slane %v1240, %v1576
        %v1578 = vlaneseq
        %v1579 = vshrl.u32 %v1578, 7
        %v1580 = vsub.s32 3, %v1579
        %v1581 = vrot.slane %v1240, %v1580
        %v1582 = vlaneseq
        %v1583 = vshrl.u32 %v1582, 7
        %v1584 = vsub.s32 4, %v1583
        %v1585 = vrot.slane %v1240, %v1584
        %v1586 = vlaneseq
        %v1587 = vshrl.u32 %v1586, 7
        %v1588 = vsub.s32 5, %v1587
        %v1589 = vrot.slane %v1240, %v1588
        %v1590 = vlaneseq
        %v1591 = vshrl.u32 %v1590, 7
        %v1592 = vsub.s32 6, %v1591
        %v1593 = vrot.slane %v1240, %v1592
        %v1594 = vlaneseq
        %v1595 = vshrl.u32 %v1594, 7
        %v1596 = vsub.s32 7, %v1595
        %v1597 = vrot.slane %v1240, %v1596
        %v1598 = vlaneseq
        %v1599 = vshrl.u32 %v1598, 7
        %v1600 = vsub.s32 0, %v1599
        %v1601 = vrot.slane %v1241, %v1600
        %v1602 = vlaneseq
        %v1603 = vshrl.u32 %v1602, 7
        %v1604 = vsub.s32 1, %v1603
        %v1605 = vrot.slane %v1241, %v1604
        %v1606 = vlaneseq
        %v1607 = vshrl.u32 %v1606, 7
        %v1608 = vsub.s32 2, %v1607
        %v1609 = vrot.slane %v1241, %v1608
        %v1610 = vlaneseq
        %v1611 = vshrl.u32 %v1610, 7
        %v1612 = vsub.s32 3, %v1611
        %v1613 = vrot.slane %v1241, %v1612
        %v1614 = vlaneseq
        %v1615 = vshrl.u32 %v1614, 7
        %v1616 = vsub.s32 4, %v1615
        %v1617 = vrot.slane %v1241, %v1616
        %v1618 = vlaneseq
        %v1619 = vshrl.u32 %v1618, 7
        %v1620 = vsub.s32 5, %v1619
        %v1621 = vrot.slane %v1241, %v1620
        %v1622 = vlaneseq
        %v1623 = vshrl.u32 %v1622, 7
        %v1624 = vsub.s32 6, %v1623
        %v1625 = vrot.slane %v1241, %v1624
        %v1626 = vlaneseq
        %v1627 = vshrl.u32 %v1626, 7
        %v1628 = vsub.s32 7, %v1627
        %v1629 = vrot.slane %v1241, %v1628
        %v1630 = vlaneseq
        %v1631 = vshrl.u32 %v1630, 7
        %v1632 = vsub.s32 0, %v1631
        %v1633 = vrot.slane %v1242, %v1632
        %v1634 = vlaneseq
        %v1635 = vshrl.u32 %v1634, 7
        %v1636 = vsub.s32 1, %v1635
        %v1637 = vrot.slane %v1242, %v1636
        %v1638 = vlaneseq
        %v1639 = vshrl.u32 %v1638, 7
        %v1640 = vsub.s32 2, %v1639
        %v1641 = vrot.slane %v1242, %v1640
        %v1642 = vlaneseq
        %v1643 = vshrl.u32 %v1642, 7
        %v1644 = vsub.s32 3, %v1643
        %v1645 = vrot.slane %v1242, %v1644
        %v1646 = vlaneseq
        %v1647 = vshrl.u32 %v1646, 7
        %v1648 = vsub.s32 4, %v1647
        %v1649 = vrot.slane %v1242, %v1648
        %v1650 = vlaneseq
        %v1651 = vshrl.u32 %v1650, 7
        %v1652 = vsub.s32 5, %v1651
        %v1653 = vrot.slane %v1242, %v1652
        %v1654 = vlaneseq
        %v1655 = vshrl.u32 %v1654, 7
        %v1656 = vsub.s32 6, %v1655
        %v1657 = vrot.slane %v1242, %v1656
        %v1658 = vlaneseq
        %v1659 = vshrl.u32 %v1658, 7
        %v1660 = vsub.s32 7, %v1659
        %v1661 = vrot.slane %v1242, %v1660
        %v1662 = vlaneseq
        %v1663 = vshrl.u32 %v1662, 7
        %v1664 = vsub.s32 0, %v1663
        %v1665 = vrot.slane %v1243, %v1664
        %v1666 = vlaneseq
        %v1667 = vshrl.u32 %v1666, 7
        %v1668 = vsub.s32 1, %v1667
        %v1669 = vrot.slane %v1243, %v1668
        %v1670 = vlaneseq
        %v1671 = vshrl.u32 %v1670, 7
        %v1672 = vsub.s32 2, %v1671
        %v1673 = vrot.slane %v1243, %v1672
        %v1674 = vlaneseq
        %v1675 = vshrl.u32 %v1674, 7
        %v1676 = vsub.s32 3, %v1675
        %v1677 = vrot.slane %v1243, %v1676
        %v1678 = vlaneseq
        %v1679 = vshrl.u32 %v1678, 7
        %v1680 = vsub.s32 4, %v1679
        %v1681 = vrot.slane %v1243, %v1680
        %v1682 = vlaneseq
        %v1683 = vshrl.u32 %v1682, 7
        %v1684 = vsub.s32 5, %v1683
        %v1685 = vrot.slane %v1243, %v1684
        %v1686 = vlaneseq
        %v1687 = vshrl.u32 %v1686, 7
        %v1688 = vsub.s32 6, %v1687
        %v1689 = vrot.slane %v1243, %v1688
        %v1690 = vlaneseq
        %v1691 = vshrl.u32 %v1690, 7
        %v1692 = vsub.s32 7, %v1691
        %v1693 = vrot.slane %v1243, %v1692
        %v1694 = vlaneseq
        %v1695 = vshrl.u32 %v1694, 7
        %v1696 = vsub.s32 0, %v1695
        %v1697 = vrot.slane %v1244, %v1696
        %v1698 = vlaneseq
        %v1699 = vshrl.u32 %v1698, 7
        %v1700 = vsub.s32 1, %v1699
        %v1701 = vrot.slane %v1244, %v1700
        %v1702 = vlaneseq
        %v1703 = vshrl.u32 %v1702, 7
        %v1704 = vsub.s32 2, %v1703
        %v1705 = vrot.slane %v1244, %v1704
        %v1706 = vlaneseq
        %v1707 = vshrl.u32 %v1706, 7
        %v1708 = vsub.s32 3, %v1707
        %v1709 = vrot.slane %v1244, %v1708
        %v1710 = vlaneseq
        %v1711 = vshrl.u32 %v1710, 7
        %v1712 = vsub.s32 4, %v1711
        %v1713 = vrot.slane %v1244, %v1712
        %v1714 = vlaneseq
        %v1715 = vshrl.u32 %v1714, 7
        %v1716 = vsub.s32 5, %v1715
        %v1717 = vrot.slane %v1244, %v1716
        %v1718 = vlaneseq
        %v1719 = vshrl.u32 %v1718, 7
        %v1720 = vsub.s32 6, %v1719
        %v1721 = vrot.slane %v1244, %v1720
        %v1722 = vlaneseq
        %v1723 = vshrl.u32 %v1722, 7
        %v1724 = vsub.s32 7, %v1723
        %v1725 = vrot.slane %v1244, %v1724
        %v1726 = vlaneseq
        %v1727 = vshrl.u32 %v1726, 7
        %v1728 = vsub.s32 0, %v1727
        %v1729 = vrot.slane %v1245, %v1728
        %v1730 = vlaneseq
        %v1731 = vshrl.u32 %v1730, 7
        %v1732 = vsub.s32 1, %v1731
        %v1733 = vrot.slane %v1245, %v1732
        %v1734 = vlaneseq
        %v1735 = vshrl.u32 %v1734, 7
        %v1736 = vsub.s32 2, %v1735
        %v1737 = vrot.slane %v1245, %v1736
        %v1738 = vlaneseq
        %v1739 = vshrl.u32 %v1738, 7
        %v1740 = vsub.s32 3, %v1739
        %v1741 = vrot.slane %v1245, %v1740
        %v1742 = vlaneseq
        %v1743 = vshrl.u32 %v1742, 7
        %v1744 = vsub.s32 4, %v1743
        %v1745 = vrot.slane %v1245, %v1744
        %v1746 = vlaneseq
        %v1747 = vshrl.u32 %v1746, 7
        %v1748 = vsub.s32 5, %v1747
        %v1749 = vrot.slane %v1245, %v1748
        %v1750 = vlaneseq
        %v1751 = vshrl.u32 %v1750, 7
        %v1752 = vsub.s32 6, %v1751
        %v1753 = vrot.slane %v1245, %v1752
        %v1754 = vlaneseq
        %v1755 = vshrl.u32 %v1754, 7
        %v1756 = vsub.s32 7, %v1755
        %v1757 = vrot.slane %v1245, %v1756
        %v1758 = vcombine.low %v1249, %v1253
        %v1759 = vcombine.low %v1257, %v1261
        %v1760 = vcombine.low %v1265, %v1269
        %v1761 = vcombine.low %v1273, %v1277
        %v1763 = vunpack.c.l.s4 1966171168
        %v1764 = vunpack.c.0.s8 %v1763
        %v1765 = vlaneseq
        %v1766 = vshrl.u32 %v1765, 7
        %v1767 = vsub.s32 %v1764, %v1766
        %v1768 = vrot.slane %v1758, %v1767
        %v1770 = vunpack.c.l.s4 1966171168
        %v1771 = vunpack.c.0.s8 %v1770
        %v1772 = vlaneseq
        %v1773 = vshrl.u32 %v1772, 7
        %v1774 = vsub.s32 %v1771, %v1773
        %v1775 = vrot.slane %v1759, %v1774
        %v1777 = vunpack.c.l.s4 1966171168
        %v1778 = vunpack.c.0.s8 %v1777
        %v1779 = vlaneseq
        %v1780 = vshrl.u32 %v1779, 7
        %v1781 = vsub.s32 %v1778, %v1780
        %v1782 = vrot.slane %v1760, %v1781
        %v1784 = vunpack.c.l.s4 1966171168
        %v1785 = vunpack.c.0.s8 %v1784
        %v1786 = vlaneseq
        %v1787 = vshrl.u32 %v1786, 7
        %v1788 = vsub.s32 %v1785, %v1787
        %v1789 = vrot.slane %v1761, %v1788
        %v1790 = vcombine.low %v1768, %v1775
        %v1791 = vcombine.low %v1782, %v1789
        %v1793 = vunpack.c.l.s4 1966171168
        %v1794 = vunpack.c.0.s8 %v1793
        %v1795 = vlaneseq
        %v1796 = vshrl.u32 %v1795, 7
        %v1797 = vsub.s32 %v1794, %v1796
        %v1798 = vrot.slane %v1790, %v1797
        %v1800 = vunpack.c.l.s4 1966171168
        %v1801 = vunpack.c.0.s8 %v1800
        %v1802 = vlaneseq
        %v1803 = vshrl.u32 %v1802, 7
        %v1804 = vsub.s32 %v1801, %v1803
        %v1805 = vrot.slane %v1791, %v1804
        %v1806 = vcombine.low %v1798, %v1805
        %v1807 = vcombine.low %v1281, %v1285
        %v1808 = vcombine.low %v1289, %v1293
        %v1809 = vcombine.low %v1297, %v1301
        %v1810 = vcombine.low %v1305, %v1309
        %v1812 = vunpack.c.l.s4 1966171168
        %v1813 = vunpack.c.0.s8 %v1812
        %v1814 = vlaneseq
        %v1815 = vshrl.u32 %v1814, 7
        %v1816 = vsub.s32 %v1813, %v1815
        %v1817 = vrot.slane %v1807, %v1816
        %v1819 = vunpack.c.l.s4 1966171168
        %v1820 = vunpack.c.0.s8 %v1819
        %v1821 = vlaneseq
        %v1822 = vshrl.u32 %v1821, 7
        %v1823 = vsub.s32 %v1820, %v1822
        %v1824 = vrot.slane %v1808, %v1823
        %v1826 = vunpack.c.l.s4 1966171168
        %v1827 = vunpack.c.0.s8 %v1826
        %v1828 = vlaneseq
        %v1829 = vshrl.u32 %v1828, 7
        %v1830 = vsub.s32 %v1827, %v1829
        %v1831 = vrot.slane %v1809, %v1830
        %v1833 = vunpack.c.l.s4 1966171168
        %v1834 = vunpack.c.0.s8 %v1833
        %v1835 = vlaneseq
        %v1836 = vshrl.u32 %v1835, 7
        %v1837 = vsub.s32 %v1834, %v1836
        %v1838 = vrot.slane %v1810, %v1837
        %v1839 = vcombine.low %v1817, %v1824
        %v1840 = vcombine.low %v1831, %v1838
        %v1842 = vunpack.c.l.s4 1966171168
        %v1843 = vunpack.c.0.s8 %v1842
        %v1844 = vlaneseq
        %v1845 = vshrl.u32 %v1844, 7
        %v1846 = vsub.s32 %v1843, %v1845
        %v1847 = vrot.slane %v1839, %v1846
        %v1849 = vunpack.c.l.s4 1966171168
        %v1850 = vunpack.c.0.s8 %v1849
        %v1851 = vlaneseq
        %v1852 = vshrl.u32 %v1851, 7
        %v1853 = vsub.s32 %v1850, %v1852
        %v1854 = vrot.slane %v1840, %v1853
        %v1855 = vcombine.low %v1847, %v1854
        %v1856 = vcombine.low %v1313, %v1317
        %v1857 = vcombine.low %v1321, %v1325
        %v1858 = vcombine.low %v1329, %v1333
        %v1859 = vcombine.low %v1337, %v1341
        %v1861 = vunpack.c.l.s4 1966171168
        %v1862 = vunpack.c.0.s8 %v1861
        %v1863 = vlaneseq
        %v1864 = vshrl.u32 %v1863, 7
        %v1865 = vsub.s32 %v1862, %v1864
        %v1866 = vrot.slane %v1856, %v1865
        %v1868 = vunpack.c.l.s4 1966171168
        %v1869 = vunpack.c.0.s8 %v1868
        %v1870 = vlaneseq
        %v1871 = vshrl.u32 %v1870, 7
        %v1872 = vsub.s32 %v1869, %v1871
        %v1873 = vrot.slane %v1857, %v1872
        %v1875 = vunpack.c.l.s4 1966171168
        %v1876 = vunpack.c.0.s8 %v1875
        %v1877 = vlaneseq
        %v1878 = vshrl.u32 %v1877, 7
        %v1879 = vsub.s32 %v1876, %v1878
        %v1880 = vrot.slane %v1858, %v1879
        %v1882 = vunpack.c.l.s4 1966171168
        %v1883 = vunpack.c.0.s8 %v1882
        %v1884 = vlaneseq
        %v1885 = vshrl.u32 %v1884, 7
        %v1886 = vsub.s32 %v1883, %v1885
        %v1887 = vrot.slane %v1859, %v1886
        %v1888 = vcombine.low %v1866, %v1873
        %v1889 = vcombine.low %v1880, %v1887
        %v1891 = vunpack.c.l.s4 1966171168
        %v1892 = vunpack.c.0.s8 %v1891
        %v1893 = vlaneseq
        %v1894 = vshrl.u32 %v1893, 7
        %v1895 = vsub.s32 %v1892, %v1894
        %v1896 = vrot.slane %v1888, %v1895
        %v1898 = vunpack.c.l.s4 1966171168
        %v1899 = vunpack.c.0.s8 %v1898
        %v1900 = vlaneseq
        %v1901 = vshrl.u32 %v1900, 7
        %v1902 = vsub.s32 %v1899, %v1901
        %v1903 = vrot.slane %v1889, %v1902
        %v1904 = vcombine.low %v1896, %v1903
        %v1905 = vcombine.low %v1345, %v1349
        %v1906 = vcombine.low %v1353, %v1357
        %v1907 = vcombine.low %v1361, %v1365
        %v1908 = vcombine.low %v1369, %v1373
        %v1910 = vunpack.c.l.s4 1966171168
        %v1911 = vunpack.c.0.s8 %v1910
        %v1912 = vlaneseq
        %v1913 = vshrl.u32 %v1912, 7
        %v1914 = vsub.s32 %v1911, %v1913
        %v1915 = vrot.slane %v1905, %v1914
        %v1917 = vunpack.c.l.s4 1966171168
        %v1918 = vunpack.c.0.s8 %v1917
        %v1919 = vlaneseq
        %v1920 = vshrl.u32 %v1919, 7
        %v1921 = vsub.s32 %v1918, %v1920
        %v1922 = vrot.slane %v1906, %v1921
        %v1924 = vunpack.c.l.s4 1966171168
        %v1925 = vunpack.c.0.s8 %v1924
        %v1926 = vlaneseq
        %v1927 = vshrl.u32 %v1926, 7
        %v1928 = vsub.s32 %v1925, %v1927
        %v1929 = vrot.slane %v1907, %v1928
        %v1931 = vunpack.c.l.s4 1966171168
        %v1932 = vunpack.c.0.s8 %v1931
        %v1933 = vlaneseq
        %v1934 = vshrl.u32 %v1933, 7
        %v1935 = vsub.s32 %v1932, %v1934
        %v1936 = vrot.slane %v1908, %v1935
        %v1937 = vcombine.low %v1915, %v1922
        %v1938 = vcombine.low %v1929, %v1936
        %v1940 = vunpack.c.l.s4 1966171168
        %v1941 = vunpack.c.0.s8 %v1940
        %v1942 = vlaneseq
        %v1943 = vshrl.u32 %v1942, 7
        %v1944 = vsub.s32 %v1941, %v1943
        %v1945 = vrot.slane %v1937, %v1944
        %v1947 = vunpack.c.l.s4 1966171168
        %v1948 = vunpack.c.0.s8 %v1947
        %v1949 = vlaneseq
        %v1950 = vshrl.u32 %v1949, 7
        %v1951 = vsub.s32 %v1948, %v1950
        %v1952 = vrot.slane %v1938, %v1951
        %v1953 = vcombine.low %v1945, %v1952
        %v1954 = vcombine.low %v1377, %v1381
        %v1955 = vcombine.low %v1385, %v1389
        %v1956 = vcombine.low %v1393, %v1397
        %v1957 = vcombine.low %v1401, %v1405
        %v1959 = vunpack.c.l.s4 1966171168
        %v1960 = vunpack.c.0.s8 %v1959
        %v1961 = vlaneseq
        %v1962 = vshrl.u32 %v1961, 7
        %v1963 = vsub.s32 %v1960, %v1962
        %v1964 = vrot.slane %v1954, %v1963
        %v1966 = vunpack.c.l.s4 1966171168
        %v1967 = vunpack.c.0.s8 %v1966
        %v1968 = vlaneseq
        %v1969 = vshrl.u32 %v1968, 7
        %v1970 = vsub.s32 %v1967, %v1969
        %v1971 = vrot.slane %v1955, %v1970
        %v1973 = vunpack.c.l.s4 1966171168
        %v1974 = vunpack.c.0.s8 %v1973
        %v1975 = vlaneseq
        %v1976 = vshrl.u32 %v1975, 7
        %v1977 = vsub.s32 %v1974, %v1976
        %v1978 = vrot.slane %v1956, %v1977
        %v1980 = vunpack.c.l.s4 1966171168
        %v1981 = vunpack.c.0.s8 %v1980
        %v1982 = vlaneseq
        %v1983 = vshrl.u32 %v1982, 7
        %v1984 = vsub.s32 %v1981, %v1983
        %v1985 = vrot.slane %v1957, %v1984
        %v1986 = vcombine.low %v1964, %v1971
        %v1987 = vcombine.low %v1978, %v1985
        %v1989 = vunpack.c.l.s4 1966171168
        %v1990 = vunpack.c.0.s8 %v1989
        %v1991 = vlaneseq
        %v1992 = vshrl.u32 %v1991, 7
        %v1993 = vsub.s32 %v1990, %v1992
        %v1994 = vrot.slane %v1986, %v1993
        %v1996 = vunpack.c.l.s4 1966171168
        %v1997 = vunpack.c.0.s8 %v1996
        %v1998 = vlaneseq
        %v1999 = vshrl.u32 %v1998, 7
        %v2000 = vsub.s32 %v1997, %v1999
        %v2001 = vrot.slane %v1987, %v2000
        %v2002 = vcombine.low %v1994, %v2001
        %v2003 = vcombine.low %v1409, %v1413
        %v2004 = vcombine.low %v1417, %v1421
        %v2005 = vcombine.low %v1425, %v1429
        %v2006 = vcombine.low %v1433, %v1437
        %v2008 = vunpack.c.l.s4 1966171168
        %v2009 = vunpack.c.0.s8 %v2008
        %v2010 = vlaneseq
        %v2011 = vshrl.u32 %v2010, 7
        %v2012 = vsub.s32 %v2009, %v2011
        %v2013 = vrot.slane %v2003, %v2012
        %v2015 = vunpack.c.l.s4 1966171168
        %v2016 = vunpack.c.0.s8 %v2015
        %v2017 = vlaneseq
        %v2018 = vshrl.u32 %v2017, 7
        %v2019 = vsub.s32 %v2016, %v2018
        %v2020 = vrot.slane %v2004, %v2019
        %v2022 = vunpack.c.l.s4 1966171168
        %v2023 = vunpack.c.0.s8 %v2022
        %v2024 = vlaneseq
        %v2025 = vshrl.u32 %v2024, 7
        %v2026 = vsub.s32 %v2023, %v2025
        %v2027 = vrot.slane %v2005, %v2026
        %v2029 = vunpack.c.l.s4 1966171168
        %v2030 = vunpack.c.0.s8 %v2029
        %v2031 = vlaneseq
        %v2032 = vshrl.u32 %v2031, 7
        %v2033 = vsub.s32 %v2030, %v2032
        %v2034 = vrot.slane %v2006, %v2033
        %v2035 = vcombine.low %v2013, %v2020
        %v2036 = vcombine.low %v2027, %v2034
        %v2038 = vunpack.c.l.s4 1966171168
        %v2039 = vunpack.c.0.s8 %v2038
        %v2040 = vlaneseq
        %v2041 = vshrl.u32 %v2040, 7
        %v2042 = vsub.s32 %v2039, %v2041
        %v2043 = vrot.slane %v2035, %v2042
        %v2045 = vunpack.c.l.s4 1966171168
        %v2046 = vunpack.c.0.s8 %v2045
        %v2047 = vlaneseq
        %v2048 = vshrl.u32 %v2047, 7
        %v2049 = vsub.s32 %v2046, %v2048
        %v2050 = vrot.slane %v2036, %v2049
        %v2051 = vcombine.low %v2043, %v2050
        %v2052 = vcombine.low %v1441, %v1445
        %v2053 = vcombine.low %v1449, %v1453
        %v2054 = vcombine.low %v1457, %v1461
        %v2055 = vcombine.low %v1465, %v1469
        %v2057 = vunpack.c.l.s4 1966171168
        %v2058 = vunpack.c.0.s8 %v2057
        %v2059 = vlaneseq
        %v2060 = vshrl.u32 %v2059, 7
        %v2061 = vsub.s32 %v2058, %v2060
        %v2062 = vrot.slane %v2052, %v2061
        %v2064 = vunpack.c.l.s4 1966171168
        %v2065 = vunpack.c.0.s8 %v2064
        %v2066 = vlaneseq
        %v2067 = vshrl.u32 %v2066, 7
        %v2068 = vsub.s32 %v2065, %v2067
        %v2069 = vrot.slane %v2053, %v2068
        %v2071 = vunpack.c.l.s4 1966171168
        %v2072 = vunpack.c.0.s8 %v2071
        %v2073 = vlaneseq
        %v2074 = vshrl.u32 %v2073, 7
        %v2075 = vsub.s32 %v2072, %v2074
        %v2076 = vrot.slane %v2054, %v2075
        %v2078 = vunpack.c.l.s4 1966171168
        %v2079 = vunpack.c.0.s8 %v2078
        %v2080 = vlaneseq
        %v2081 = vshrl.u32 %v2080, 7
        %v2082 = vsub.s32 %v2079, %v2081
        %v2083 = vrot.slane %v2055, %v2082
        %v2084 = vcombine.low %v2062, %v2069
        %v2085 = vcombine.low %v2076, %v2083
        %v2087 = vunpack.c.l.s4 1966171168
        %v2088 = vunpack.c.0.s8 %v2087
        %v2089 = vlaneseq
        %v2090 = vshrl.u32 %v2089, 7
        %v2091 = vsub.s32 %v2088, %v2090
        %v2092 = vrot.slane %v2084, %v2091
        %v2094 = vunpack.c.l.s4 1966171168
        %v2095 = vunpack.c.0.s8 %v2094
        %v2096 = vlaneseq
        %v2097 = vshrl.u32 %v2096, 7
        %v2098 = vsub.s32 %v2095, %v2097
        %v2099 = vrot.slane %v2085, %v2098
        %v2100 = vcombine.low %v2092, %v2099
        %v2101 = vcombine.low %v1473, %v1477
        %v2102 = vcombine.low %v1481, %v1485
        %v2103 = vcombine.low %v1489, %v1493
        %v2104 = vcombine.low %v1497, %v1501
        %v2106 = vunpack.c.l.s4 1966171168
        %v2107 = vunpack.c.0.s8 %v2106
        %v2108 = vlaneseq
        %v2109 = vshrl.u32 %v2108, 7
        %v2110 = vsub.s32 %v2107, %v2109
        %v2111 = vrot.slane %v2101, %v2110
        %v2113 = vunpack.c.l.s4 1966171168
        %v2114 = vunpack.c.0.s8 %v2113
        %v2115 = vlaneseq
        %v2116 = vshrl.u32 %v2115, 7
        %v2117 = vsub.s32 %v2114, %v2116
        %v2118 = vrot.slane %v2102, %v2117
        %v2120 = vunpack.c.l.s4 1966171168
        %v2121 = vunpack.c.0.s8 %v2120
        %v2122 = vlaneseq
        %v2123 = vshrl.u32 %v2122, 7
        %v2124 = vsub.s32 %v2121, %v2123
        %v2125 = vrot.slane %v2103, %v2124
        %v2127 = vunpack.c.l.s4 1966171168
        %v2128 = vunpack.c.0.s8 %v2127
        %v2129 = vlaneseq
        %v2130 = vshrl.u32 %v2129, 7
        %v2131 = vsub.s32 %v2128, %v2130
        %v2132 = vrot.slane %v2104, %v2131
        %v2133 = vcombine.low %v2111, %v2118
        %v2134 = vcombine.low %v2125, %v2132
        %v2136 = vunpack.c.l.s4 1966171168
        %v2137 = vunpack.c.0.s8 %v2136
        %v2138 = vlaneseq
        %v2139 = vshrl.u32 %v2138, 7
        %v2140 = vsub.s32 %v2137, %v2139
        %v2141 = vrot.slane %v2133, %v2140
        %v2143 = vunpack.c.l.s4 1966171168
        %v2144 = vunpack.c.0.s8 %v2143
        %v2145 = vlaneseq
        %v2146 = vshrl.u32 %v2145, 7
        %v2147 = vsub.s32 %v2144, %v2146
        %v2148 = vrot.slane %v2134, %v2147
        %v2149 = vcombine.low %v2141, %v2148
        %v2150 = vcombine.low %v1505, %v1509
        %v2151 = vcombine.low %v1513, %v1517
        %v2152 = vcombine.low %v1521, %v1525
        %v2153 = vcombine.low %v1529, %v1533
        %v2155 = vunpack.c.l.s4 1966171168
        %v2156 = vunpack.c.0.s8 %v2155
        %v2157 = vlaneseq
        %v2158 = vshrl.u32 %v2157, 7
        %v2159 = vsub.s32 %v2156, %v2158
        %v2160 = vrot.slane %v2150, %v2159
        %v2162 = vunpack.c.l.s4 1966171168
        %v2163 = vunpack.c.0.s8 %v2162
        %v2164 = vlaneseq
        %v2165 = vshrl.u32 %v2164, 7
        %v2166 = vsub.s32 %v2163, %v2165
        %v2167 = vrot.slane %v2151, %v2166
        %v2169 = vunpack.c.l.s4 1966171168
        %v2170 = vunpack.c.0.s8 %v2169
        %v2171 = vlaneseq
        %v2172 = vshrl.u32 %v2171, 7
        %v2173 = vsub.s32 %v2170, %v2172
        %v2174 = vrot.slane %v2152, %v2173
        %v2176 = vunpack.c.l.s4 1966171168
        %v2177 = vunpack.c.0.s8 %v2176
        %v2178 = vlaneseq
        %v2179 = vshrl.u32 %v2178, 7
        %v2180 = vsub.s32 %v2177, %v2179
        %v2181 = vrot.slane %v2153, %v2180
        %v2182 = vcombine.low %v2160, %v2167
        %v2183 = vcombine.low %v2174, %v2181
        %v2185 = vunpack.c.l.s4 1966171168
        %v2186 = vunpack.c.0.s8 %v2185
        %v2187 = vlaneseq
        %v2188 = vshrl.u32 %v2187, 7
        %v2189 = vsub.s32 %v2186, %v2188
        %v2190 = vrot.slane %v2182, %v2189
        %v2192 = vunpack.c.l.s4 1966171168
        %v2193 = vunpack.c.0.s8 %v2192
        %v2194 = vlaneseq
        %v2195 = vshrl.u32 %v2194, 7
        %v2196 = vsub.s32 %v2193, %v2195
        %v2197 = vrot.slane %v2183, %v2196
        %v2198 = vcombine.low %v2190, %v2197
        %v2199 = vcombine.low %v1537, %v1541
        %v2200 = vcombine.low %v1545, %v1549
        %v2201 = vcombine.low %v1553, %v1557
        %v2202 = vcombine.low %v1561, %v1565
        %v2204 = vunpack.c.l.s4 1966171168
        %v2205 = vunpack.c.0.s8 %v2204
        %v2206 = vlaneseq
        %v2207 = vshrl.u32 %v2206, 7
        %v2208 = vsub.s32 %v2205, %v2207
        %v2209 = vrot.slane %v2199, %v2208
        %v2211 = vunpack.c.l.s4 1966171168
        %v2212 = vunpack.c.0.s8 %v2211
        %v2213 = vlaneseq
        %v2214 = vshrl.u32 %v2213, 7
        %v2215 = vsub.s32 %v2212, %v2214
        %v2216 = vrot.slane %v2200, %v2215
        %v2218 = vunpack.c.l.s4 1966171168
        %v2219 = vunpack.c.0.s8 %v2218
        %v2220 = vlaneseq
        %v2221 = vshrl.u32 %v2220, 7
        %v2222 = vsub.s32 %v2219, %v2221
        %v2223 = vrot.slane %v2201, %v2222
        %v2225 = vunpack.c.l.s4 1966171168
        %v2226 = vunpack.c.0.s8 %v2225
        %v2227 = vlaneseq
        %v2228 = vshrl.u32 %v2227, 7
        %v2229 = vsub.s32 %v2226, %v2228
        %v2230 = vrot.slane %v2202, %v2229
        %v2231 = vcombine.low %v2209, %v2216
        %v2232 = vcombine.low %v2223, %v2230
        %v2234 = vunpack.c.l.s4 1966171168
        %v2235 = vunpack.c.0.s8 %v2234
        %v2236 = vlaneseq
        %v2237 = vshrl.u32 %v2236, 7
        %v2238 = vsub.s32 %v2235, %v2237
        %v2239 = vrot.slane %v2231, %v2238
        %v2241 = vunpack.c.l.s4 1966171168
        %v2242 = vunpack.c.0.s8 %v2241
        %v2243 = vlaneseq
        %v2244 = vshrl.u32 %v2243, 7
        %v2245 = vsub.s32 %v2242, %v2244
        %v2246 = vrot.slane %v2232, %v2245
        %v2247 = vcombine.low %v2239, %v2246
        %v2248 = vcombine.low %v1569, %v1573
        %v2249 = vcombine.low %v1577, %v1581
        %v2250 = vcombine.low %v1585, %v1589
        %v2251 = vcombine.low %v1593, %v1597
        %v2253 = vunpack.c.l.s4 1966171168
        %v2254 = vunpack.c.0.s8 %v2253
        %v2255 = vlaneseq
        %v2256 = vshrl.u32 %v2255, 7
        %v2257 = vsub.s32 %v2254, %v2256
        %v2258 = vrot.slane %v2248, %v2257
        %v2260 = vunpack.c.l.s4 1966171168
        %v2261 = vunpack.c.0.s8 %v2260
        %v2262 = vlaneseq
        %v2263 = vshrl.u32 %v2262, 7
        %v2264 = vsub.s32 %v2261, %v2263
        %v2265 = vrot.slane %v2249, %v2264
        %v2267 = vunpack.c.l.s4 1966171168
        %v2268 = vunpack.c.0.s8 %v2267
        %v2269 = vlaneseq
        %v2270 = vshrl.u32 %v2269, 7
        %v2271 = vsub.s32 %v2268, %v2270
        %v2272 = vrot.slane %v2250, %v2271
        %v2274 = vunpack.c.l.s4 1966171168
        %v2275 = vunpack.c.0.s8 %v2274
        %v2276 = vlaneseq
        %v2277 = vshrl.u32 %v2276, 7
        %v2278 = vsub.s32 %v2275, %v2277
        %v2279 = vrot.slane %v2251, %v2278
        %v2280 = vcombine.low %v2258, %v2265
        %v2281 = vcombine.low %v2272, %v2279
        %v2283 = vunpack.c.l.s4 1966171168
        %v2284 = vunpack.c.0.s8 %v2283
        %v2285 = vlaneseq
        %v2286 = vshrl.u32 %v2285, 7
        %v2287 = vsub.s32 %v2284, %v2286
        %v2288 = vrot.slane %v2280, %v2287
        %v2290 = vunpack.c.l.s4 1966171168
        %v2291 = vunpack.c.0.s8 %v2290
        %v2292 = vlaneseq
        %v2293 = vshrl.u32 %v2292, 7
        %v2294 = vsub.s32 %v2291, %v2293
        %v2295 = vrot.slane %v2281, %v2294
        %v2296 = vcombine.low %v2288, %v2295
        %v2297 = vcombine.low %v1601, %v1605
        %v2298 = vcombine.low %v1609, %v1613
        %v2299 = vcombine.low %v1617, %v1621
        %v2300 = vcombine.low %v1625, %v1629
        %v2302 = vunpack.c.l.s4 1966171168
        %v2303 = vunpack.c.0.s8 %v2302
        %v2304 = vlaneseq
        %v2305 = vshrl.u32 %v2304, 7
        %v2306 = vsub.s32 %v2303, %v2305
        %v2307 = vrot.slane %v2297, %v2306
        %v2309 = vunpack.c.l.s4 1966171168
        %v2310 = vunpack.c.0.s8 %v2309
        %v2311 = vlaneseq
        %v2312 = vshrl.u32 %v2311, 7
        %v2313 = vsub.s32 %v2310, %v2312
        %v2314 = vrot.slane %v2298, %v2313
        %v2316 = vunpack.c.l.s4 1966171168
        %v2317 = vunpack.c.0.s8 %v2316
        %v2318 = vlaneseq
        %v2319 = vshrl.u32 %v2318, 7
        %v2320 = vsub.s32 %v2317, %v2319
        %v2321 = vrot.slane %v2299, %v2320
        %v2323 = vunpack.c.l.s4 1966171168
        %v2324 = vunpack.c.0.s8 %v2323
        %v2325 = vlaneseq
        %v2326 = vshrl.u32 %v2325, 7
        %v2327 = vsub.s32 %v2324, %v2326
        %v2328 = vrot.slane %v2300, %v2327
        %v2329 = vcombine.low %v2307, %v2314
        %v2330 = vcombine.low %v2321, %v2328
        %v2332 = vunpack.c.l.s4 1966171168
        %v2333 = vunpack.c.0.s8 %v2332
        %v2334 = vlaneseq
        %v2335 = vshrl.u32 %v2334, 7
        %v2336 = vsub.s32 %v2333, %v2335
        %v2337 = vrot.slane %v2329, %v2336
        %v2339 = vunpack.c.l.s4 1966171168
        %v2340 = vunpack.c.0.s8 %v2339
        %v2341 = vlaneseq
        %v2342 = vshrl.u32 %v2341, 7
        %v2343 = vsub.s32 %v2340, %v2342
        %v2344 = vrot.slane %v2330, %v2343
        %v2345 = vcombine.low %v2337, %v2344
        %v2346 = vcombine.low %v1633, %v1637
        %v2347 = vcombine.low %v1641, %v1645
        %v2348 = vcombine.low %v1649, %v1653
        %v2349 = vcombine.low %v1657, %v1661
        %v2351 = vunpack.c.l.s4 1966171168
        %v2352 = vunpack.c.0.s8 %v2351
        %v2353 = vlaneseq
        %v2354 = vshrl.u32 %v2353, 7
        %v2355 = vsub.s32 %v2352, %v2354
        %v2356 = vrot.slane %v2346, %v2355
        %v2358 = vunpack.c.l.s4 1966171168
        %v2359 = vunpack.c.0.s8 %v2358
        %v2360 = vlaneseq
        %v2361 = vshrl.u32 %v2360, 7
        %v2362 = vsub.s32 %v2359, %v2361
        %v2363 = vrot.slane %v2347, %v2362
        %v2365 = vunpack.c.l.s4 1966171168
        %v2366 = vunpack.c.0.s8 %v2365
        %v2367 = vlaneseq
        %v2368 = vshrl.u32 %v2367, 7
        %v2369 = vsub.s32 %v2366, %v2368
        %v2370 = vrot.slane %v2348, %v2369
        %v2372 = vunpack.c.l.s4 1966171168
        %v2373 = vunpack.c.0.s8 %v2372
        %v2374 = vlaneseq
        %v2375 = vshrl.u32 %v2374, 7
        %v2376 = vsub.s32 %v2373, %v2375
        %v2377 = vrot.slane %v2349, %v2376
        %v2378 = vcombine.low %v2356, %v2363
        %v2379 = vcombine.low %v2370, %v2377
        %v2381 = vunpack.c.l.s4 1966171168
        %v2382 = vunpack.c.0.s8 %v2381
        %v2383 = vlaneseq
        %v2384 = vshrl.u32 %v2383, 7
        %v2385 = vsub.s32 %v2382, %v2384
        %v2386 = vrot.slane %v2378, %v2385
        %v2388 = vunpack.c.l.s4 1966171168
        %v2389 = vunpack.c.0.s8 %v2388
        %v2390 = vlaneseq
        %v2391 = vshrl.u32 %v2390, 7
        %v2392 = vsub.s32 %v2389, %v2391
        %v2393 = vrot.slane %v2379, %v2392
        %v2394 = vcombine.low %v2386, %v2393
        %v2395 = vcombine.low %v1665, %v1669
        %v2396 = vcombine.low %v1673, %v1677
        %v2397 = vcombine.low %v1681, %v1685
        %v2398 = vcombine.low %v1689, %v1693
        %v2400 = vunpack.c.l.s4 1966171168
        %v2401 = vunpack.c.0.s8 %v2400
        %v2402 = vlaneseq
        %v2403 = vshrl.u32 %v2402, 7
        %v2404 = vsub.s32 %v2401, %v2403
        %v2405 = vrot.slane %v2395, %v2404
        %v2407 = vunpack.c.l.s4 1966171168
        %v2408 = vunpack.c.0.s8 %v2407
        %v2409 = vlaneseq
        %v2410 = vshrl.u32 %v2409, 7
        %v2411 = vsub.s32 %v2408, %v2410
        %v2412 = vrot.slane %v2396, %v2411
        %v2414 = vunpack.c.l.s4 1966171168
        %v2415 = vunpack.c.0.s8 %v2414
        %v2416 = vlaneseq
        %v2417 = vshrl.u32 %v2416, 7
        %v2418 = vsub.s32 %v2415, %v2417
        %v2419 = vrot.slane %v2397, %v2418
        %v2421 = vunpack.c.l.s4 1966171168
        %v2422 = vunpack.c.0.s8 %v2421
        %v2423 = vlaneseq
        %v2424 = vshrl.u32 %v2423, 7
        %v2425 = vsub.s32 %v2422, %v2424
        %v2426 = vrot.slane %v2398, %v2425
        %v2427 = vcombine.low %v2405, %v2412
        %v2428 = vcombine.low %v2419, %v2426
        %v2430 = vunpack.c.l.s4 1966171168
        %v2431 = vunpack.c.0.s8 %v2430
        %v2432 = vlaneseq
        %v2433 = vshrl.u32 %v2432, 7
        %v2434 = vsub.s32 %v2431, %v2433
        %v2435 = vrot.slane %v2427, %v2434
        %v2437 = vunpack.c.l.s4 1966171168
        %v2438 = vunpack.c.0.s8 %v2437
        %v2439 = vlaneseq
        %v2440 = vshrl.u32 %v2439, 7
        %v2441 = vsub.s32 %v2438, %v2440
        %v2442 = vrot.slane %v2428, %v2441
        %v2443 = vcombine.low %v2435, %v2442
        %v2444 = vcombine.low %v1697, %v1701
        %v2445 = vcombine.low %v1705, %v1709
        %v2446 = vcombine.low %v1713, %v1717
        %v2447 = vcombine.low %v1721, %v1725
        %v2449 = vunpack.c.l.s4 1966171168
        %v2450 = vunpack.c.0.s8 %v2449
        %v2451 = vlaneseq
        %v2452 = vshrl.u32 %v2451, 7
        %v2453 = vsub.s32 %v2450, %v2452
        %v2454 = vrot.slane %v2444, %v2453
        %v2456 = vunpack.c.l.s4 1966171168
        %v2457 = vunpack.c.0.s8 %v2456
        %v2458 = vlaneseq
        %v2459 = vshrl.u32 %v2458, 7
        %v2460 = vsub.s32 %v2457, %v2459
        %v2461 = vrot.slane %v2445, %v2460
        %v2463 = vunpack.c.l.s4 1966171168
        %v2464 = vunpack.c.0.s8 %v2463
        %v2465 = vlaneseq
        %v2466 = vshrl.u32 %v2465, 7
        %v2467 = vsub.s32 %v2464, %v2466
        %v2468 = vrot.slane %v2446, %v2467
        %v2470 = vunpack.c.l.s4 1966171168
        %v2471 = vunpack.c.0.s8 %v2470
        %v2472 = vlaneseq
        %v2473 = vshrl.u32 %v2472, 7
        %v2474 = vsub.s32 %v2471, %v2473
        %v2475 = vrot.slane %v2447, %v2474
        %v2476 = vcombine.low %v2454, %v2461
        %v2477 = vcombine.low %v2468, %v2475
        %v2479 = vunpack.c.l.s4 1966171168
        %v2480 = vunpack.c.0.s8 %v2479
        %v2481 = vlaneseq
        %v2482 = vshrl.u32 %v2481, 7
        %v2483 = vsub.s32 %v2480, %v2482
        %v2484 = vrot.slane %v2476, %v2483
        %v2486 = vunpack.c.l.s4 1966171168
        %v2487 = vunpack.c.0.s8 %v2486
        %v2488 = vlaneseq
        %v2489 = vshrl.u32 %v2488, 7
        %v2490 = vsub.s32 %v2487, %v2489
        %v2491 = vrot.slane %v2477, %v2490
        %v2492 = vcombine.low %v2484, %v2491
        %v2493 = vcombine.low %v1729, %v1733
        %v2494 = vcombine.low %v1737, %v1741
        %v2495 = vcombine.low %v1745, %v1749
        %v2496 = vcombine.low %v1753, %v1757
        %v2498 = vunpack.c.l.s4 1966171168
        %v2499 = vunpack.c.0.s8 %v2498
        %v2500 = vlaneseq
        %v2501 = vshrl.u32 %v2500, 7
        %v2502 = vsub.s32 %v2499, %v2501
        %v2503 = vrot.slane %v2493, %v2502
        %v2505 = vunpack.c.l.s4 1966171168
        %v2506 = vunpack.c.0.s8 %v2505
        %v2507 = vlaneseq
        %v2508 = vshrl.u32 %v2507, 7
        %v2509 = vsub.s32 %v2506, %v2508
        %v2510 = vrot.slane %v2494, %v2509
        %v2512 = vunpack.c.l.s4 1966171168
        %v2513 = vunpack.c.0.s8 %v2512
        %v2514 = vlaneseq
        %v2515 = vshrl.u32 %v2514, 7
        %v2516 = vsub.s32 %v2513, %v2515
        %v2517 = vrot.slane %v2495, %v2516
        %v2519 = vunpack.c.l.s4 1966171168
        %v2520 = vunpack.c.0.s8 %v2519
        %v2521 = vlaneseq
        %v2522 = vshrl.u32 %v2521, 7
        %v2523 = vsub.s32 %v2520, %v2522
        %v2524 = vrot.slane %v2496, %v2523
        %v2525 = vcombine.low %v2503, %v2510
        %v2526 = vcombine.low %v2517, %v2524
        %v2528 = vunpack.c.l.s4 1966171168
        %v2529 = vunpack.c.0.s8 %v2528
        %v2530 = vlaneseq
        %v2531 = vshrl.u32 %v2530, 7
        %v2532 = vsub.s32 %v2529, %v2531
        %v2533 = vrot.slane %v2525, %v2532
        %v2535 = vunpack.c.l.s4 1966171168
        %v2536 = vunpack.c.0.s8 %v2535
        %v2537 = vlaneseq
        %v2538 = vshrl.u32 %v2537, 7
        %v2539 = vsub.s32 %v2536, %v2538
        %v2540 = vrot.slane %v2526, %v2539
        %v2541 = vcombine.low %v2533, %v2540
        %2542 = vset.pattern.permute.xlu0 0
        %2543 = vperm.xlu0 %2542, %v1806
        %v2544 = vpop.permute.xlu0 %2543
        %2545 = vset.pattern.permute.xlu0 0
        %2546 = vperm.xlu0 %2545, %v1855
        %v2547 = vpop.permute.xlu0 %2546
        %2548 = vset.pattern.permute.xlu0 0
        %2549 = vperm.xlu0 %2548, %v1904
        %v2550 = vpop.permute.xlu0 %2549
        %2551 = vset.pattern.permute.xlu0 0
        %2552 = vperm.xlu0 %2551, %v1953
        %v2553 = vpop.permute.xlu0 %2552
        %2554 = vset.pattern.permute.xlu0 0
        %2555 = vperm.xlu0 %2554, %v2002
        %v2556 = vpop.permute.xlu0 %2555
        %2557 = vset.pattern.permute.xlu0 0
        %2558 = vperm.xlu0 %2557, %v2051
        %v2559 = vpop.permute.xlu0 %2558
        %2560 = vset.pattern.permute.xlu0 0
        %2561 = vperm.xlu0 %2560, %v2100
        %v2562 = vpop.permute.xlu0 %2561
        %2563 = vset.pattern.permute.xlu0 0
        %2564 = vperm.xlu0 %2563, %v2149
        %v2565 = vpop.permute.xlu0 %2564
        %2566 = vset.pattern.permute.xlu0 0
        %2567 = vperm.xlu0 %2566, %v2198
        %v2568 = vpop.permute.xlu0 %2567
        %2569 = vset.pattern.permute.xlu0 0
        %2570 = vperm.xlu0 %2569, %v2247
        %v2571 = vpop.permute.xlu0 %2570
        %2572 = vset.pattern.permute.xlu0 0
        %2573 = vperm.xlu0 %2572, %v2296
        %v2574 = vpop.permute.xlu0 %2573
        %2575 = vset.pattern.permute.xlu0 0
        %2576 = vperm.xlu0 %2575, %v2345
        %v2577 = vpop.permute.xlu0 %2576
        %2578 = vset.pattern.permute.xlu0 0
        %2579 = vperm.xlu0 %2578, %v2394
        %v2580 = vpop.permute.xlu0 %2579
        %2581 = vset.pattern.permute.xlu0 0
        %2582 = vperm.xlu0 %2581, %v2443
        %v2583 = vpop.permute.xlu0 %2582
        %2584 = vset.pattern.permute.xlu0 0
        %2585 = vperm.xlu0 %2584, %v2492
        %v2586 = vpop.permute.xlu0 %2585
        %2587 = vset.pattern.permute.xlu0 0
        %2588 = vperm.xlu0 %2587, %v2541
        %v2589 = vpop.permute.xlu0 %2588
        %v2590 = vlaneseq
        %v2591 = vshrl.u32 %v2590, 7
        %v2592 = vsub.s32 %v843, %v2591
        %v2593 = vrot.slane %v2544, %v2592
        %v2594 = vadd.s32 %v843, 4294967288
        %v2595 = vlaneseq
        %v2596 = vshrl.u32 %v2595, 7
        %v2597 = vsub.s32 %v2594, %v2596
        %v2598 = vrot.slane %v2547, %v2597
        %vm2599 = vcmask 130112
        %v2600 = vsel %vm2599, %v2598, %v2593
        %v2601 = vadd.s32 %v843, 4294967280
        %v2602 = vlaneseq
        %v2603 = vshrl.u32 %v2602, 7
        %v2604 = vsub.s32 %v2601, %v2603
        %v2605 = vrot.slane %v2550, %v2604
        %vm2606 = vcmask 195712
        %v2607 = vsel %vm2606, %v2605, %v2600
        %v2608 = vadd.s32 %v843, 4294967272
        %v2609 = vlaneseq
        %v2610 = vshrl.u32 %v2609, 7
        %v2611 = vsub.s32 %v2608, %v2610
        %v2612 = vrot.slane %v2553, %v2611
        %vm2613 = vcmask 261312
        %v2614 = vsel %vm2613, %v2612, %v2607
        %v2615 = vadd.s32 %v843, 4294967264
        %v2616 = vlaneseq
        %v2617 = vshrl.u32 %v2616, 7
        %v2618 = vsub.s32 %v2615, %v2617
        %v2619 = vrot.slane %v2556, %v2618
        %vm2620 = vcmask 326912
        %v2621 = vsel %vm2620, %v2619, %v2614
        %v2622 = vadd.s32 %v843, 4294967256
        %v2623 = vlaneseq
        %v2624 = vshrl.u32 %v2623, 7
        %v2625 = vsub.s32 %v2622, %v2624
        %v2626 = vrot.slane %v2559, %v2625
        %vm2627 = vcmask 392512
        %v2628 = vsel %vm2627, %v2626, %v2621
        %v2629 = vadd.s32 %v843, 4294967248
        %v2630 = vlaneseq
        %v2631 = vshrl.u32 %v2630, 7
        %v2632 = vsub.s32 %v2629, %v2631
        %v2633 = vrot.slane %v2562, %v2632
        %vm2634 = vcmask 458112
        %v2635 = vsel %vm2634, %v2633, %v2628
        %v2636 = vadd.s32 %v843, 4294967240
        %v2637 = vlaneseq
        %v2638 = vshrl.u32 %v2637, 7
        %v2639 = vsub.s32 %v2636, %v2638
        %v2640 = vrot.slane %v2565, %v2639
        %vm2641 = vcmask 523712
        %v2642 = vsel %vm2641, %v2640, %v2635
        %v2643 = vadd.s32 %v843, 4294967232
        %v2644 = vlaneseq
        %v2645 = vshrl.u32 %v2644, 7
        %v2646 = vsub.s32 %v2643, %v2645
        %v2647 = vrot.slane %v2568, %v2646
        %vm2648 = vcmask 589312
        %v2649 = vsel %vm2648, %v2647, %v2642
        %v2650 = vadd.s32 %v843, 4294967224
        %v2651 = vlaneseq
        %v2652 = vshrl.u32 %v2651, 7
        %v2653 = vsub.s32 %v2650, %v2652
        %v2654 = vrot.slane %v2571, %v2653
        %vm2655 = vcmask 654912
        %v2656 = vsel %vm2655, %v2654, %v2649
        %v2657 = vadd.s32 %v843, 4294967216
        %v2658 = vlaneseq
        %v2659 = vshrl.u32 %v2658, 7
        %v2660 = vsub.s32 %v2657, %v2659
        %v2661 = vrot.slane %v2574, %v2660
        %vm2662 = vcmask 720512
        %v2663 = vsel %vm2662, %v2661, %v2656
        %v2664 = vadd.s32 %v843, 4294967208
        %v2665 = vlaneseq
        %v2666 = vshrl.u32 %v2665, 7
        %v2667 = vsub.s32 %v2664, %v2666
        %v2668 = vrot.slane %v2577, %v2667
        %vm2669 = vcmask 786112
        %v2670 = vsel %vm2669, %v2668, %v2663
        %v2671 = vadd.s32 %v843, 4294967200
        %v2672 = vlaneseq
        %v2673 = vshrl.u32 %v2672, 7
        %v2674 = vsub.s32 %v2671, %v2673
        %v2675 = vrot.slane %v2580, %v2674
        %vm2676 = vcmask 851712
        %v2677 = vsel %vm2676, %v2675, %v2670
        %v2678 = vadd.s32 %v843, 4294967192
        %v2679 = vlaneseq
        %v2680 = vshrl.u32 %v2679, 7
        %v2681 = vsub.s32 %v2678, %v2680
        %v2682 = vrot.slane %v2583, %v2681
        %vm2683 = vcmask 917312
        %v2684 = vsel %vm2683, %v2682, %v2677
        %v2685 = vadd.s32 %v843, 4294967184
        %v2686 = vlaneseq
        %v2687 = vshrl.u32 %v2686, 7
        %v2688 = vsub.s32 %v2685, %v2687
        %v2689 = vrot.slane %v2586, %v2688
        %vm2690 = vcmask 982912
        %v2691 = vsel %vm2690, %v2689, %v2684
        %v2692 = vadd.s32 %v843, 4294967176
        %v2693 = vlaneseq
        %v2694 = vshrl.u32 %v2693, 7
        %v2695 = vsub.s32 %v2692, %v2694
        %v2696 = vrot.slane %v2589, %v2695
        %vm2697 = vcmask 1048512
        %v2698 = vsel %vm2697, %v2696, %v2691
        %v2700 = vunpack.c.l.s4 1966171168
        %v2701 = vunpack.c.0.s8 %v2700
        %v2702 = vlaneseq
        %v2703 = vshrl.u32 %v2702, 7
        %v2704 = vsub.s32 %v2701, %v2703
        %v2705 = vrot.slane %v2698, %v2704
        %v2707 = vunpack.c.l.s4 1966171168
        %v2708 = vunpack.c.0.s8 %v2707
        %v2709 = vlaneseq
        %v2710 = vshrl.u32 %v2709, 7
        %v2711 = vsub.s32 %v2708, %v2710
        %v2712 = vrot.slane %v2705, %v2711
        %vm2713 = vcmp.ne.s32.totalorder %v2712, 0
        %vm2714 = vmor %vm347, %vm2713
        %vm2715 = vmand %vm2714, %vm1206
        %s2716 = scalar_lea.vmem [#allocation3], %s478
        %v2717 = vld [vmem:[%s2716] sm:$0x1]
        %v2718 = vld [vmem:[#allocation8] sm:$0x1]
        %v2719 = vsel %vm2715, %v2717, 0.0
        %vm2720 = vcmask 1040384
        %v2721 = vsel %vm2720, %v2719, 0.0
        %2722 = vadd.xlane.f32.xlu0 %v2721
        %v2723 = vpop.xlane.xlu0 %2722
        %v2724 = vrot.slane %v2723, 4
        %v2725 = vadd.f32 %v2723, %v2724
        %v2726 = vrot.slane %v2725, 2
        %v2727 = vadd.f32 %v2725, %v2726
        %v2728 = vrot.slane %v2727, 1
        %v2729 = vadd.f32 %v2727, %v2728
        %s2730 = vtos %v2729
        %v2731 = vstv %s2730
        %v2732 = vadd.f32 %v2718, %v2731
        %vm2733 = vcmask 0
        %2734 = vst.msk [vmem:[#allocation8] sm:$0x1] %vm2733, %v2732
        // Predicated region
        $region63: #{tpu_custom_call.1} parent=47 // pred_check
          %p2735 = pneg %p349
        $region64: #{tpu_custom_call.1} parent=47 // pred_check_branch
          %2737 = sbr.rel (%p2735) target = $region66
        $region65: #{tpu_custom_call.1} parent=47 // pred_region
          %v2738 = vld [vmem:[#allocation7] sm:$0x1]
          %2740 = vset.pattern.permute.xlu0 0
          %2741 = vperm.xlu0 %2740, %v2738
          %v2742 = vpop.permute.xlu0 %2741
          %v2744 = vlaneseq
          %v2745 = vshrl.u32 %v2744, 7
          %v2746 = vsub.s32 0, %v2745
          %v2747 = vrot.slane %v2742, %v2746
          %2748 = vst [vmem:[%s345] sm:$0x1] %v2747
          %v2749 = vld [vmem:[#allocation8] sm:$0x1]
          %2751 = vset.pattern.permute.xlu0 0
          %2752 = vperm.xlu0 %2751, %v2749
          %v2753 = vpop.permute.xlu0 %2752
          %v2755 = vlaneseq
          %v2756 = vshrl.u32 %v2755, 7
          %v2757 = vsub.s32 0, %v2756
          %v2758 = vrot.slane %v2753, %v2757
          %2759 = vst [vmem:[%s345 + $0x1] sm:$0x1] %v2758
          %v2760 = vld [vmem:[#allocation6] sm:$0x1]
          %v2761 = vcvt.s32.f32 %v2760
          %2763 = vset.pattern.permute.xlu0 0
          %2764 = vperm.xlu0 %2763, %v2761
          %v2765 = vpop.permute.xlu0 %2764
          %v2767 = vlaneseq
          %v2768 = vshrl.u32 %v2767, 7
          %v2769 = vsub.s32 0, %v2768
          %v2770 = vrot.slane %v2765, %v2769
          %2771 = vst [vmem:[%s345 + $0x2] sm:$0x1] %v2770
        $region66: #{tpu_custom_call.1} parent=47 // pred_fallthru
          _
      $region48: #{tpu_custom_call.1} parent=35 // pred_fallthru
        _
      %p2772 = scmp.lt.s32.totalorder %s20, 1
      %s2773 = scalar_select %p2772, %s20, 1
      %s2774 = smul.addr %s2773, 4
      %s2775 = scalar_lea.vmem %s4, %s2774
      // Predicated region
      $region67: #{tpu_custom_call.1} parent=35 // pred_check
        %p2776 = pneg %p176
      $region68: #{tpu_custom_call.1} parent=35 // pred_check_branch
        %2778 = sbr.rel (%p2776) target = $region70
      $region69: #{tpu_custom_call.1} parent=35 // pred_region
        _
      $region70: #{tpu_custom_call.1} parent=35 // pred_fallthru
        _
    $region36: #{tpu_custom_call.1} parent=5 // pred_fallthru
      _
    %p2779 = scmp.le.s32.totalorder 2, %s10
    // Predicated region
    $region71: #{tpu_custom_call.1} parent=5 // pred_check
      %p2780 = pneg %p2779
    $region72: #{tpu_custom_call.1} parent=5 // pred_check_branch
      %2782 = sbr.rel (%p2780) target = $region74
    $region73: #{tpu_custom_call.1} parent=5 // pred_region
      %s2783 = ssub.s32 %s10, 2
      // Predicated region
      $region75: #{tpu_custom_call.1} parent=73 // pred_check
        %p2784 = pneg %p182
      $region76: #{tpu_custom_call.1} parent=73 // pred_check_branch
        %2786 = sbr.rel (%p2784) target = $region78
      $region77: #{tpu_custom_call.1} parent=73 // pred_region
        %p2787 = scmp.lt.s32.totalorder %s23, 1
        %s2788 = scalar_select %p2787, %s23, 1
        %s2789 = smul.addr %s2788, 4
        %s2790 = scalar_lea.vmem %s4, %s2789
      $region78: #{tpu_custom_call.1} parent=73 // pred_fallthru
        _
    $region74: #{tpu_custom_call.1} parent=5 // pred_fallthru
      _
  $region6: #{tpu_custom_call.1} parent=0 // loop_footer
    %s14 = sadd.s32 1, %s10
  $region7: #{tpu_custom_call.1} parent=0 // loop_footer_branch
    %9 = sbr.rel target = $region3
  $region8: #{tpu_custom_call.1} parent=0 // loop_exit
    _

</llo_original>
